<compile_context>
chip_gen: v6e
topology: v6e:2x2x1
jax: 0.10.0
libtpu: 0.0.40
codegen_flags: <defaults>
</compile_context>

<pallas_src>
import functools

import jax
import jax.numpy as jnp
from jax.experimental import pallas as pl
from jax.experimental.pallas import tpu as pltpu

NEG_INF = -3.0e38  # -inf stand-in for f32 maxpool padding


def _silu(v):
    # exp goes to the EUP; exact f32 form keeps the 1e-4 tolerance safe.
    return v * (1.0 / (1.0 + jnp.exp(-v)))


def _pool_same_flat(t, W, k, edge_masks):
    """k x k, stride-1, 'same' max-pool (implicit -inf padding) on a flat
    row-major (C, H*W) plane.

    Separable: row taps are flat shifts by multiples of W (no column-wrap
    issue), column taps are flat shifts by 1..pad combined with a
    column-edge mask so they never read across a row boundary.
    """
    C, L = t.shape
    pad = k // 2

    # --- vertical (row) pass ------------------------------------------------
    rmax = t
    for s in range(1, pad + 1):
        below = jnp.pad(t[:, s * W:], ((0, 0), (0, s * W)),
                        constant_values=NEG_INF)
        above = jnp.pad(t[:, :L - s * W], ((0, 0), (s * W, 0)),
                        constant_values=NEG_INF)
        rmax = jnp.maximum(rmax, jnp.maximum(below, above))

    # --- horizontal (column) pass --------------------------------------------
    out = rmax
    for s in range(1, pad + 1):
        ge_s, lt_s = edge_masks[s - 1]
        right = jnp.pad(rmax[:, s:], ((0, 0), (0, s)), constant_values=NEG_INF)
        right = jnp.where(lt_s, right, NEG_INF)
        left = jnp.pad(rmax[:, :L - s], ((0, 0), (s, 0)),
                       constant_values=NEG_INF)
        left = jnp.where(ge_s, left, NEG_INF)
        out = jnp.maximum(out, jnp.maximum(right, left))
    return out


def _spp_kernel(x_ref, w1_ref, b1_ref, w2_ref, b2_ref, o_ref, *, H, W, k):
    # x_ref : (1, Cin, H*W)  one batch image, NCHW-flattened          (VMEM)
    # w1_ref: (Cin, C1)      conv1 weight with BN1 scale folded in    (SMEM)
    # b1_ref: (C1,)          folded BN1 shift                         (SMEM)
    # w2_ref: (4*C1, Cout)   conv2 weight with BN2 scale folded in    (SMEM)
    # b2_ref: (Cout,)        folded BN2 shift                         (SMEM)
    # o_ref : (1, Cout, H*W) one batch output                         (VMEM)
    Cin = x_ref.shape[1]
    C1 = w1_ref.shape[1]
    Cout = o_ref.shape[1]
    L = H * W
    pad = k // 2

    xt = x_ref[0]                                    # (Cin, L)
    xrows = [xt[c:c + 1, :] for c in range(Cin)]     # lane-dense (1, L) rows

    # --- Conv1 (1x1, BN folded) + SiLU: scalar(SMEM) * vreg FMAs -------------
    h_rows = []
    for c1 in range(C1):
        acc = xrows[0] * w1_ref[0, c1]
        for cin in range(1, Cin):
            acc = acc + xrows[cin] * w1_ref[cin, c1]
        h_rows.append(_silu(acc + b1_ref[c1]))
    h = jnp.concatenate(h_rows, axis=0)              # (C1, L)

    # --- three chained k x k same max-pools (separable, lane shifts) ---------
    col = jax.lax.broadcasted_iota(jnp.int32, (C1, L), 1)
    if (W & (W - 1)) == 0:
        col = jnp.bitwise_and(col, W - 1)            # column index within row
    else:
        col = col - (col // W) * W
    edge_masks = [(col >= s, col < W - s) for s in range(1, pad + 1)]

    y1 = _pool_same_flat(h, W, k, edge_masks)
    y2 = _pool_same_flat(y1, W, k, edge_masks)
    y3 = _pool_same_flat(y2, W, k, edge_masks)

    # --- Conv2 (1x1, BN folded) on cat([h, y1, y2, y3]) + SiLU ----------------
    # The concat is never materialized: per-output-channel scalar FMAs over
    # the 4*C1 lane-dense planes, accumulated into a dense (Cout, L) slab.
    planes = (h, y1, y2, y3)
    rows = [planes[blk][c1:c1 + 1, :]
            for blk in range(4) for c1 in range(C1)]  # j = blk*C1 + c1
    o_rows = []
    for co in range(Cout):
        acc = rows[0] * w2_ref[0, co]
        for j in range(1, 4 * C1):
            acc = acc + rows[j] * w2_ref[j, co]
        o_rows.append(acc + b2_ref[co])
    o = _silu(jnp.concatenate(o_rows, axis=0))        # (Cout, L), lane-dense
    o_ref[0] = o.astype(o_ref.dtype)


def spp_forward(x_nchw, params, *, k=5):
    """x_nchw: (N, Cin, H, W) float32. Returns (N, Cout, H, W). Eval-mode BN."""
    w1, g1, bb1, m1, v1, w2, g2, bb2, m2, v2 = params
    eps = 1e-3  # BatchNorm2d(out_ch, 0.001, 0.03) -> eps = 0.001

    # Fold eval-mode BatchNorm: the scale goes into the conv weights, only the
    # additive shift stays in-kernel.
    # TODO(synk): training-mode batch-statistics BN (and the is_first
    # track_running_stats=False path) is not reproduced here.
    s1 = g1 / jnp.sqrt(v1 + eps)
    s2 = g2 / jnp.sqrt(v2 + eps)
    w1s = (w1 * s1[None, :]).astype(jnp.float32)      # (Cin, C1)
    b1 = (bb1 - m1 * s1).astype(jnp.float32)          # (C1,)
    w2s = (w2 * s2[None, :]).astype(jnp.float32)      # (4*C1, Cout)
    b2 = (bb2 - m2 * s2).astype(jnp.float32)          # (Cout,)

    N, Cin, H, W = x_nchw.shape
    C1 = w1.shape[1]
    Cout = w2.shape[1]
    L = H * W
    assert k % 2 == 1, "odd pooling window expected"

    # NCHW-native: flatten spatial onto the lane axis (contiguous reshape, no
    # HBM relayout); channels stay on the sublane axis.
    x_flat = x_nchw.reshape(N, Cin, L)

    kernel = functools.partial(_spp_kernel, H=H, W=W, k=k)

    # TODO(synk): for real SPP sizes (Cin >= 128, large H*W) route the 1x1
    # convs through the MXU and tile H*W across the grid (or slab-DMA with
    # memory_space=pl.ANY) instead of keeping the whole image in one block.
    out_flat = pl.pallas_call(
        kernel,
        out_shape=jax.ShapeDtypeStruct((N, Cout, L), jnp.float32),
        grid=(N,),
        in_specs=[
            pl.BlockSpec((1, Cin, L), lambda n: (n, 0, 0)),
            pl.BlockSpec(memory_space=pltpu.MemorySpace.SMEM),   # w1s
            pl.BlockSpec(memory_space=pltpu.MemorySpace.SMEM),   # b1
            pl.BlockSpec(memory_space=pltpu.MemorySpace.SMEM),   # w2s
            pl.BlockSpec(memory_space=pltpu.MemorySpace.SMEM),   # b2
        ],
        out_specs=pl.BlockSpec((1, Cout, L), lambda n: (n, 0, 0)),
        compiler_params=pltpu.CompilerParams(
            dimension_semantics=("parallel",)),
    )(x_flat, w1s, b1, w2s, b2)

    return out_flat.reshape(N, Cout, H, W)


# ------------------------- plain-JAX reference ------------------------------
def spp_reference(x_nchw, params, *, k=5):
    w1, g1, bb1, m1, v1, w2, g2, bb2, m2, v2 = params
    eps = 1e-3

    def conv_bn_silu(x, w, g, b, m, v):
        y = jnp.einsum('nchw,cd->ndhw', x, w)
        s = g / jnp.sqrt(v + eps)
        y = y * s.reshape(1, -1, 1, 1) + (b - m * s).reshape(1, -1, 1, 1)
        return y * jax.nn.sigmoid(y)

    def maxpool(x):
        pad = k // 2
        H, W = x.shape[2], x.shape[3]
        xp = jnp.pad(x, ((0, 0), (0, 0), (pad, pad), (pad, pad)),
                     constant_values=NEG_INF)
        out = jnp.full_like(x, NEG_INF)
        for di in range(k):
            for dj in range(k):
                out = jnp.maximum(out, xp[:, :, di:di + H, dj:dj + W])
        return out

    h = conv_bn_silu(x_nchw, w1, g1, bb1, m1, v1)
    y1 = maxpool(h)
    y2 = maxpool(y1)
    y3 = maxpool(y2)
    cat = jnp.concatenate([h, y1, y2, y3], axis=1)
    return conv_bn_silu(cat, w2, g2, bb2, m2, v2)


# ----------------------------------- main -----------------------------------
if __name__ == "__main__":
    # Small shapes consistent with the module: N=2, Cin=4, H=W=16, Cout=8, k=5
    N, Cin, H, W = 2, 4, 16, 16
    Cout, K = 8, 5
    C1 = Cin // 2          # conv1 output channels
    Ccat = 4 * C1          # = 2 * Cin, input channels to conv2

    key = jax.random.PRNGKey(0)
    ks = jax.random.split(key, 8)

    # Deterministic synthetic parameters (conv weights stored as (Cin, Cout)
    # channel matmuls — equivalent to PyTorch (Cout, Cin, 1, 1) 1x1 kernels).
    w1 = jax.random.normal(ks[0], (Cin, C1), jnp.float32) * 0.2
    g1 = 1.0 + 0.1 * jax.random.normal(ks[1], (C1,), jnp.float32)
    bb1 = 0.1 * jax.random.normal(ks[2], (C1,), jnp.float32)
    m1 = 0.05 * jax.random.normal(ks[3], (C1,), jnp.float32)
    v1 = jnp.abs(1.0 + 0.1 * jax.random.normal(ks[3], (C1,), jnp.float32))

    w2 = jax.random.normal(ks[4], (Ccat, Cout), jnp.float32) * 0.2
    g2 = 1.0 + 0.1 * jax.random.normal(ks[5], (Cout,), jnp.float32)
    bb2 = 0.1 * jax.random.normal(ks[6], (Cout,), jnp.float32)
    m2 = 0.05 * jax.random.normal(ks[7], (Cout,), jnp.float32)
    v2 = jnp.abs(1.0 + 0.1 * jax.random.normal(ks[7], (Cout,), jnp.float32))

    params = (w1, g1, bb1, m1, v1, w2, g2, bb2, m2, v2)

    x = jax.random.normal(jax.random.PRNGKey(42), (N, Cin, H, W), jnp.float32)

    out = spp_forward(x, params, k=K)
    out = jax.block_until_ready(out)

    ref = spp_reference(x, params, k=K)
    assert out.shape == (N, Cout, H, W)
    assert jnp.allclose(out, ref, atol=1e-4, rtol=1e-4), "mismatch vs reference"

    print("KERNEL_OK")
</pallas_src>

<mosaic_0001>
module attributes {stable_mosaic.version = 11 : i64} {
  func.func @_spp_kernel(%arg0: i32, %arg1: memref<1x4x256xf32, #tpu.memory_space<vmem>>, %arg2: memref<4x2xf32, #tpu.memory_space<smem>>, %arg3: memref<2xf32, #tpu.memory_space<smem>>, %arg4: memref<8x8xf32, #tpu.memory_space<smem>>, %arg5: memref<8xf32, #tpu.memory_space<smem>>, %arg6: memref<1x8x256xf32, #tpu.memory_space<vmem>>) attributes {dimension_semantics = [#tpu.dimension_semantics<parallel>], iteration_bounds = array<i64: 2>, scalar_prefetch = 0 : i64, scratch_operands = 0 : i64, tpu.core_type = #tpu.core_type<tc>, window_params = [{transform_indices = @transform_0, window_bounds = array<i64: 1, 4, 256>}, {transform_indices = @transform_1, window_bounds = array<i64: 4, 2>}, {transform_indices = @transform_2, window_bounds = array<i64: 2>}, {transform_indices = @transform_3, window_bounds = array<i64: 8, 8>}, {transform_indices = @transform_4, window_bounds = array<i64: 8>}, {transform_indices = @transform_5, window_bounds = array<i64: 1, 8, 256>}]} {
    %c0 = arith.constant 0 : index
    %c0_0 = arith.constant 0 : index
    %c0_1 = arith.constant 0 : index
    %0 = vector.load %arg1[%c0, %c0_0, %c0_1] : memref<1x4x256xf32, #tpu.memory_space<vmem>>, vector<1x4x256xf32>
    %1 = vector.shape_cast %0 : vector<1x4x256xf32> to vector<4x256xf32>
    %2 = vector.extract_strided_slice %1 {offsets = [0, 0], sizes = [1, 256], strides = [1, 1]} : vector<4x256xf32> to vector<1x256xf32>
    %3 = vector.extract_strided_slice %1 {offsets = [1, 0], sizes = [1, 256], strides = [1, 1]} : vector<4x256xf32> to vector<1x256xf32>
    %4 = vector.extract_strided_slice %1 {offsets = [2, 0], sizes = [1, 256], strides = [1, 1]} : vector<4x256xf32> to vector<1x256xf32>
    %5 = vector.extract_strided_slice %1 {offsets = [3, 0], sizes = [1, 256], strides = [1, 1]} : vector<4x256xf32> to vector<1x256xf32>
    %c0_2 = arith.constant 0 : index
    %c0_3 = arith.constant 0 : index
    %6 = memref.load %arg2[%c0_2, %c0_3] : memref<4x2xf32, #tpu.memory_space<smem>>
    %7 = vector.broadcast %6 : f32 to vector<1x256xf32>
    %8 = arith.mulf %2, %7 : vector<1x256xf32>
    %c1 = arith.constant 1 : index
    %c0_4 = arith.constant 0 : index
    %9 = memref.load %arg2[%c1, %c0_4] : memref<4x2xf32, #tpu.memory_space<smem>>
    %10 = vector.broadcast %9 : f32 to vector<1x256xf32>
    %11 = arith.mulf %3, %10 : vector<1x256xf32>
    %12 = arith.addf %8, %11 : vector<1x256xf32>
    %c2 = arith.constant 2 : index
    %c0_5 = arith.constant 0 : index
    %13 = memref.load %arg2[%c2, %c0_5] : memref<4x2xf32, #tpu.memory_space<smem>>
    %14 = vector.broadcast %13 : f32 to vector<1x256xf32>
    %15 = arith.mulf %4, %14 : vector<1x256xf32>
    %16 = arith.addf %12, %15 : vector<1x256xf32>
    %c3 = arith.constant 3 : index
    %c0_6 = arith.constant 0 : index
    %17 = memref.load %arg2[%c3, %c0_6] : memref<4x2xf32, #tpu.memory_space<smem>>
    %18 = vector.broadcast %17 : f32 to vector<1x256xf32>
    %19 = arith.mulf %5, %18 : vector<1x256xf32>
    %20 = arith.addf %16, %19 : vector<1x256xf32>
    %c0_7 = arith.constant 0 : index
    %21 = memref.load %arg3[%c0_7] : memref<2xf32, #tpu.memory_space<smem>>
    %22 = vector.broadcast %21 : f32 to vector<1x256xf32>
    %23 = arith.addf %20, %22 : vector<1x256xf32>
    %cst = arith.constant 0.000000e+00 : f32
    %24 = vector.broadcast %cst : f32 to vector<1x256xf32>
    %25 = arith.subf %24, %23 : vector<1x256xf32>
    %26 = math.exp %25 : vector<1x256xf32>
    %cst_8 = arith.constant 1.000000e+00 : f32
    %27 = vector.broadcast %cst_8 : f32 to vector<1x256xf32>
    %28 = arith.addf %27, %26 : vector<1x256xf32>
    %cst_9 = arith.constant 1.000000e+00 : f32
    %29 = vector.broadcast %cst_9 : f32 to vector<1x256xf32>
    %30 = arith.divf %29, %28 : vector<1x256xf32>
    %31 = arith.mulf %23, %30 : vector<1x256xf32>
    %c0_10 = arith.constant 0 : index
    %c1_11 = arith.constant 1 : index
    %32 = memref.load %arg2[%c0_10, %c1_11] : memref<4x2xf32, #tpu.memory_space<smem>>
    %33 = vector.broadcast %32 : f32 to vector<1x256xf32>
    %34 = arith.mulf %2, %33 : vector<1x256xf32>
    %c1_12 = arith.constant 1 : index
    %c1_13 = arith.constant 1 : index
    %35 = memref.load %arg2[%c1_12, %c1_13] : memref<4x2xf32, #tpu.memory_space<smem>>
    %36 = vector.broadcast %35 : f32 to vector<1x256xf32>
    %37 = arith.mulf %3, %36 : vector<1x256xf32>
    %38 = arith.addf %34, %37 : vector<1x256xf32>
    %c2_14 = arith.constant 2 : index
    %c1_15 = arith.constant 1 : index
    %39 = memref.load %arg2[%c2_14, %c1_15] : memref<4x2xf32, #tpu.memory_space<smem>>
    %40 = vector.broadcast %39 : f32 to vector<1x256xf32>
    %41 = arith.mulf %4, %40 : vector<1x256xf32>
    %42 = arith.addf %38, %41 : vector<1x256xf32>
    %c3_16 = arith.constant 3 : index
    %c1_17 = arith.constant 1 : index
    %43 = memref.load %arg2[%c3_16, %c1_17] : memref<4x2xf32, #tpu.memory_space<smem>>
    %44 = vector.broadcast %43 : f32 to vector<1x256xf32>
    %45 = arith.mulf %5, %44 : vector<1x256xf32>
    %46 = arith.addf %42, %45 : vector<1x256xf32>
    %c1_18 = arith.constant 1 : index
    %47 = memref.load %arg3[%c1_18] : memref<2xf32, #tpu.memory_space<smem>>
    %48 = vector.broadcast %47 : f32 to vector<1x256xf32>
    %49 = arith.addf %46, %48 : vector<1x256xf32>
    %cst_19 = arith.constant 0.000000e+00 : f32
    %50 = vector.broadcast %cst_19 : f32 to vector<1x256xf32>
    %51 = arith.subf %50, %49 : vector<1x256xf32>
    %52 = math.exp %51 : vector<1x256xf32>
    %cst_20 = arith.constant 1.000000e+00 : f32
    %53 = vector.broadcast %cst_20 : f32 to vector<1x256xf32>
    %54 = arith.addf %53, %52 : vector<1x256xf32>
    %cst_21 = arith.constant 1.000000e+00 : f32
    %55 = vector.broadcast %cst_21 : f32 to vector<1x256xf32>
    %56 = arith.divf %55, %54 : vector<1x256xf32>
    %57 = arith.mulf %49, %56 : vector<1x256xf32>
    %58 = tpu.concatenate %31, %57 in 0 : vector<1x256xf32>, vector<1x256xf32> -> vector<2x256xf32>
    %59 = tpu.iota {dimensions = array<i32: 1>} : vector<2x256xi32>
    %c15_i32 = arith.constant 15 : i32
    %60 = vector.broadcast %c15_i32 : i32 to vector<2x256xi32>
    %61 = arith.andi %59, %60 : vector<2x256xi32>
    %c1_i32 = arith.constant 1 : i32
    %62 = vector.broadcast %c1_i32 : i32 to vector<2x256xi32>
    %63 = arith.cmpi sge, %61, %62 : vector<2x256xi32>
    %c15_i32_22 = arith.constant 15 : i32
    %64 = vector.broadcast %c15_i32_22 : i32 to vector<2x256xi32>
    %65 = arith.cmpi slt, %61, %64 : vector<2x256xi32>
    %c2_i32 = arith.constant 2 : i32
    %66 = vector.broadcast %c2_i32 : i32 to vector<2x256xi32>
    %67 = arith.cmpi sge, %61, %66 : vector<2x256xi32>
    %c14_i32 = arith.constant 14 : i32
    %68 = vector.broadcast %c14_i32 : i32 to vector<2x256xi32>
    %69 = arith.cmpi slt, %61, %68 : vector<2x256xi32>
    %70 = vector.extract_strided_slice %58 {offsets = [0, 16], sizes = [2, 240], strides = [1, 1]} : vector<2x256xf32> to vector<2x240xf32>
    %cst_23 = arith.constant -3.000000e+38 : f32
    %71 = vector.broadcast %cst_23 : f32 to vector<2x16xf32>
    %72 = tpu.concatenate %70, %71 in 1 : vector<2x240xf32>, vector<2x16xf32> -> vector<2x256xf32>
    %73 = vector.extract_strided_slice %58 {offsets = [0, 0], sizes = [2, 240], strides = [1, 1]} : vector<2x256xf32> to vector<2x240xf32>
    %cst_24 = arith.constant -3.000000e+38 : f32
    %74 = vector.broadcast %cst_24 : f32 to vector<2x16xf32>
    %75 = tpu.concatenate %74, %73 in 1 : vector<2x16xf32>, vector<2x240xf32> -> vector<2x256xf32>
    %76 = arith.maximumf %72, %75 : vector<2x256xf32>
    %77 = arith.maximumf %58, %76 : vector<2x256xf32>
    %78 = vector.extract_strided_slice %58 {offsets = [0, 32], sizes = [2, 224], strides = [1, 1]} : vector<2x256xf32> to vector<2x224xf32>
    %cst_25 = arith.constant -3.000000e+38 : f32
    %79 = vector.broadcast %cst_25 : f32 to vector<2x32xf32>
    %80 = tpu.concatenate %78, %79 in 1 : vector<2x224xf32>, vector<2x32xf32> -> vector<2x256xf32>
    %81 = vector.extract_strided_slice %58 {offsets = [0, 0], sizes = [2, 224], strides = [1, 1]} : vector<2x256xf32> to vector<2x224xf32>
    %cst_26 = arith.constant -3.000000e+38 : f32
    %82 = vector.broadcast %cst_26 : f32 to vector<2x32xf32>
    %83 = tpu.concatenate %82, %81 in 1 : vector<2x32xf32>, vector<2x224xf32> -> vector<2x256xf32>
    %84 = arith.maximumf %80, %83 : vector<2x256xf32>
    %85 = arith.maximumf %77, %84 : vector<2x256xf32>
    %86 = vector.extract_strided_slice %85 {offsets = [0, 1], sizes = [2, 255], strides = [1, 1]} : vector<2x256xf32> to vector<2x255xf32>
    %cst_27 = arith.constant -3.000000e+38 : f32
    %87 = vector.broadcast %cst_27 : f32 to vector<2x1xf32>
    %88 = tpu.concatenate %86, %87 in 1 : vector<2x255xf32>, vector<2x1xf32> -> vector<2x256xf32>
    %cst_28 = arith.constant -3.000000e+38 : f32
    %89 = vector.broadcast %cst_28 : f32 to vector<2x256xf32>
    %90 = arith.select %65, %88, %89 : vector<2x256xi1>, vector<2x256xf32>
    %91 = vector.extract_strided_slice %85 {offsets = [0, 0], sizes = [2, 255], strides = [1, 1]} : vector<2x256xf32> to vector<2x255xf32>
    %cst_29 = arith.constant -3.000000e+38 : f32
    %92 = vector.broadcast %cst_29 : f32 to vector<2x1xf32>
    %93 = tpu.concatenate %92, %91 in 1 : vector<2x1xf32>, vector<2x255xf32> -> vector<2x256xf32>
    %cst_30 = arith.constant -3.000000e+38 : f32
    %94 = vector.broadcast %cst_30 : f32 to vector<2x256xf32>
    %95 = arith.select %63, %93, %94 : vector<2x256xi1>, vector<2x256xf32>
    %96 = arith.maximumf %90, %95 : vector<2x256xf32>
    %97 = arith.maximumf %85, %96 : vector<2x256xf32>
    %98 = vector.extract_strided_slice %85 {offsets = [0, 2], sizes = [2, 254], strides = [1, 1]} : vector<2x256xf32> to vector<2x254xf32>
    %cst_31 = arith.constant -3.000000e+38 : f32
    %99 = vector.broadcast %cst_31 : f32 to vector<2x2xf32>
    %100 = tpu.concatenate %98, %99 in 1 : vector<2x254xf32>, vector<2x2xf32> -> vector<2x256xf32>
    %cst_32 = arith.constant -3.000000e+38 : f32
    %101 = vector.broadcast %cst_32 : f32 to vector<2x256xf32>
    %102 = arith.select %69, %100, %101 : vector<2x256xi1>, vector<2x256xf32>
    %103 = vector.extract_strided_slice %85 {offsets = [0, 0], sizes = [2, 254], strides = [1, 1]} : vector<2x256xf32> to vector<2x254xf32>
    %cst_33 = arith.constant -3.000000e+38 : f32
    %104 = vector.broadcast %cst_33 : f32 to vector<2x2xf32>
    %105 = tpu.concatenate %104, %103 in 1 : vector<2x2xf32>, vector<2x254xf32> -> vector<2x256xf32>
    %cst_34 = arith.constant -3.000000e+38 : f32
    %106 = vector.broadcast %cst_34 : f32 to vector<2x256xf32>
    %107 = arith.select %67, %105, %106 : vector<2x256xi1>, vector<2x256xf32>
    %108 = arith.maximumf %102, %107 : vector<2x256xf32>
    %109 = arith.maximumf %97, %108 : vector<2x256xf32>
    %110 = vector.extract_strided_slice %109 {offsets = [0, 16], sizes = [2, 240], strides = [1, 1]} : vector<2x256xf32> to vector<2x240xf32>
    %cst_35 = arith.constant -3.000000e+38 : f32
    %111 = vector.broadcast %cst_35 : f32 to vector<2x16xf32>
    %112 = tpu.concatenate %110, %111 in 1 : vector<2x240xf32>, vector<2x16xf32> -> vector<2x256xf32>
    %113 = vector.extract_strided_slice %109 {offsets = [0, 0], sizes = [2, 240], strides = [1, 1]} : vector<2x256xf32> to vector<2x240xf32>
    %cst_36 = arith.constant -3.000000e+38 : f32
    %114 = vector.broadcast %cst_36 : f32 to vector<2x16xf32>
    %115 = tpu.concatenate %114, %113 in 1 : vector<2x16xf32>, vector<2x240xf32> -> vector<2x256xf32>
    %116 = arith.maximumf %112, %115 : vector<2x256xf32>
    %117 = arith.maximumf %109, %116 : vector<2x256xf32>
    %118 = vector.extract_strided_slice %109 {offsets = [0, 32], sizes = [2, 224], strides = [1, 1]} : vector<2x256xf32> to vector<2x224xf32>
    %cst_37 = arith.constant -3.000000e+38 : f32
    %119 = vector.broadcast %cst_37 : f32 to vector<2x32xf32>
    %120 = tpu.concatenate %118, %119 in 1 : vector<2x224xf32>, vector<2x32xf32> -> vector<2x256xf32>
    %121 = vector.extract_strided_slice %109 {offsets = [0, 0], sizes = [2, 224], strides = [1, 1]} : vector<2x256xf32> to vector<2x224xf32>
    %cst_38 = arith.constant -3.000000e+38 : f32
    %122 = vector.broadcast %cst_38 : f32 to vector<2x32xf32>
    %123 = tpu.concatenate %122, %121 in 1 : vector<2x32xf32>, vector<2x224xf32> -> vector<2x256xf32>
    %124 = arith.maximumf %120, %123 : vector<2x256xf32>
    %125 = arith.maximumf %117, %124 : vector<2x256xf32>
    %126 = vector.extract_strided_slice %125 {offsets = [0, 1], sizes = [2, 255], strides = [1, 1]} : vector<2x256xf32> to vector<2x255xf32>
    %cst_39 = arith.constant -3.000000e+38 : f32
    %127 = vector.broadcast %cst_39 : f32 to vector<2x1xf32>
    %128 = tpu.concatenate %126, %127 in 1 : vector<2x255xf32>, vector<2x1xf32> -> vector<2x256xf32>
    %cst_40 = arith.constant -3.000000e+38 : f32
    %129 = vector.broadcast %cst_40 : f32 to vector<2x256xf32>
    %130 = arith.select %65, %128, %129 : vector<2x256xi1>, vector<2x256xf32>
    %131 = vector.extract_strided_slice %125 {offsets = [0, 0], sizes = [2, 255], strides = [1, 1]} : vector<2x256xf32> to vector<2x255xf32>
    %cst_41 = arith.constant -3.000000e+38 : f32
    %132 = vector.broadcast %cst_41 : f32 to vector<2x1xf32>
    %133 = tpu.concatenate %132, %131 in 1 : vector<2x1xf32>, vector<2x255xf32> -> vector<2x256xf32>
    %cst_42 = arith.constant -3.000000e+38 : f32
    %134 = vector.broadcast %cst_42 : f32 to vector<2x256xf32>
    %135 = arith.select %63, %133, %134 : vector<2x256xi1>, vector<2x256xf32>
    %136 = arith.maximumf %130, %135 : vector<2x256xf32>
    %137 = arith.maximumf %125, %136 : vector<2x256xf32>
    %138 = vector.extract_strided_slice %125 {offsets = [0, 2], sizes = [2, 254], strides = [1, 1]} : vector<2x256xf32> to vector<2x254xf32>
    %cst_43 = arith.constant -3.000000e+38 : f32
    %139 = vector.broadcast %cst_43 : f32 to vector<2x2xf32>
    %140 = tpu.concatenate %138, %139 in 1 : vector<2x254xf32>, vector<2x2xf32> -> vector<2x256xf32>
    %cst_44 = arith.constant -3.000000e+38 : f32
    %141 = vector.broadcast %cst_44 : f32 to vector<2x256xf32>
    %142 = arith.select %69, %140, %141 : vector<2x256xi1>, vector<2x256xf32>
    %143 = vector.extract_strided_slice %125 {offsets = [0, 0], sizes = [2, 254], strides = [1, 1]} : vector<2x256xf32> to vector<2x254xf32>
    %cst_45 = arith.constant -3.000000e+38 : f32
    %144 = vector.broadcast %cst_45 : f32 to vector<2x2xf32>
    %145 = tpu.concatenate %144, %143 in 1 : vector<2x2xf32>, vector<2x254xf32> -> vector<2x256xf32>
    %cst_46 = arith.constant -3.000000e+38 : f32
    %146 = vector.broadcast %cst_46 : f32 to vector<2x256xf32>
    %147 = arith.select %67, %145, %146 : vector<2x256xi1>, vector<2x256xf32>
    %148 = arith.maximumf %142, %147 : vector<2x256xf32>
    %149 = arith.maximumf %137, %148 : vector<2x256xf32>
    %150 = vector.extract_strided_slice %149 {offsets = [0, 16], sizes = [2, 240], strides = [1, 1]} : vector<2x256xf32> to vector<2x240xf32>
    %cst_47 = arith.constant -3.000000e+38 : f32
    %151 = vector.broadcast %cst_47 : f32 to vector<2x16xf32>
    %152 = tpu.concatenate %150, %151 in 1 : vector<2x240xf32>, vector<2x16xf32> -> vector<2x256xf32>
    %153 = vector.extract_strided_slice %149 {offsets = [0, 0], sizes = [2, 240], strides = [1, 1]} : vector<2x256xf32> to vector<2x240xf32>
    %cst_48 = arith.constant -3.000000e+38 : f32
    %154 = vector.broadcast %cst_48 : f32 to vector<2x16xf32>
    %155 = tpu.concatenate %154, %153 in 1 : vector<2x16xf32>, vector<2x240xf32> -> vector<2x256xf32>
    %156 = arith.maximumf %152, %155 : vector<2x256xf32>
    %157 = arith.maximumf %149, %156 : vector<2x256xf32>
    %158 = vector.extract_strided_slice %149 {offsets = [0, 32], sizes = [2, 224], strides = [1, 1]} : vector<2x256xf32> to vector<2x224xf32>
    %cst_49 = arith.constant -3.000000e+38 : f32
    %159 = vector.broadcast %cst_49 : f32 to vector<2x32xf32>
    %160 = tpu.concatenate %158, %159 in 1 : vector<2x224xf32>, vector<2x32xf32> -> vector<2x256xf32>
    %161 = vector.extract_strided_slice %149 {offsets = [0, 0], sizes = [2, 224], strides = [1, 1]} : vector<2x256xf32> to vector<2x224xf32>
    %cst_50 = arith.constant -3.000000e+38 : f32
    %162 = vector.broadcast %cst_50 : f32 to vector<2x32xf32>
    %163 = tpu.concatenate %162, %161 in 1 : vector<2x32xf32>, vector<2x224xf32> -> vector<2x256xf32>
    %164 = arith.maximumf %160, %163 : vector<2x256xf32>
    %165 = arith.maximumf %157, %164 : vector<2x256xf32>
    %166 = vector.extract_strided_slice %165 {offsets = [0, 1], sizes = [2, 255], strides = [1, 1]} : vector<2x256xf32> to vector<2x255xf32>
    %cst_51 = arith.constant -3.000000e+38 : f32
    %167 = vector.broadcast %cst_51 : f32 to vector<2x1xf32>
    %168 = tpu.concatenate %166, %167 in 1 : vector<2x255xf32>, vector<2x1xf32> -> vector<2x256xf32>
    %cst_52 = arith.constant -3.000000e+38 : f32
    %169 = vector.broadcast %cst_52 : f32 to vector<2x256xf32>
    %170 = arith.select %65, %168, %169 : vector<2x256xi1>, vector<2x256xf32>
    %171 = vector.extract_strided_slice %165 {offsets = [0, 0], sizes = [2, 255], strides = [1, 1]} : vector<2x256xf32> to vector<2x255xf32>
    %cst_53 = arith.constant -3.000000e+38 : f32
    %172 = vector.broadcast %cst_53 : f32 to vector<2x1xf32>
    %173 = tpu.concatenate %172, %171 in 1 : vector<2x1xf32>, vector<2x255xf32> -> vector<2x256xf32>
    %cst_54 = arith.constant -3.000000e+38 : f32
    %174 = vector.broadcast %cst_54 : f32 to vector<2x256xf32>
    %175 = arith.select %63, %173, %174 : vector<2x256xi1>, vector<2x256xf32>
    %176 = arith.maximumf %170, %175 : vector<2x256xf32>
    %177 = arith.maximumf %165, %176 : vector<2x256xf32>
    %178 = vector.extract_strided_slice %165 {offsets = [0, 2], sizes = [2, 254], strides = [1, 1]} : vector<2x256xf32> to vector<2x254xf32>
    %cst_55 = arith.constant -3.000000e+38 : f32
    %179 = vector.broadcast %cst_55 : f32 to vector<2x2xf32>
    %180 = tpu.concatenate %178, %179 in 1 : vector<2x254xf32>, vector<2x2xf32> -> vector<2x256xf32>
    %cst_56 = arith.constant -3.000000e+38 : f32
    %181 = vector.broadcast %cst_56 : f32 to vector<2x256xf32>
    %182 = arith.select %69, %180, %181 : vector<2x256xi1>, vector<2x256xf32>
    %183 = vector.extract_strided_slice %165 {offsets = [0, 0], sizes = [2, 254], strides = [1, 1]} : vector<2x256xf32> to vector<2x254xf32>
    %cst_57 = arith.constant -3.000000e+38 : f32
    %184 = vector.broadcast %cst_57 : f32 to vector<2x2xf32>
    %185 = tpu.concatenate %184, %183 in 1 : vector<2x2xf32>, vector<2x254xf32> -> vector<2x256xf32>
    %cst_58 = arith.constant -3.000000e+38 : f32
    %186 = vector.broadcast %cst_58 : f32 to vector<2x256xf32>
    %187 = arith.select %67, %185, %186 : vector<2x256xi1>, vector<2x256xf32>
    %188 = arith.maximumf %182, %187 : vector<2x256xf32>
    %189 = arith.maximumf %177, %188 : vector<2x256xf32>
    %190 = vector.extract_strided_slice %58 {offsets = [0, 0], sizes = [1, 256], strides = [1, 1]} : vector<2x256xf32> to vector<1x256xf32>
    %191 = vector.extract_strided_slice %58 {offsets = [1, 0], sizes = [1, 256], strides = [1, 1]} : vector<2x256xf32> to vector<1x256xf32>
    %192 = vector.extract_strided_slice %109 {offsets = [0, 0], sizes = [1, 256], strides = [1, 1]} : vector<2x256xf32> to vector<1x256xf32>
    %193 = vector.extract_strided_slice %109 {offsets = [1, 0], sizes = [1, 256], strides = [1, 1]} : vector<2x256xf32> to vector<1x256xf32>
    %194 = vector.extract_strided_slice %149 {offsets = [0, 0], sizes = [1, 256], strides = [1, 1]} : vector<2x256xf32> to vector<1x256xf32>
    %195 = vector.extract_strided_slice %149 {offsets = [1, 0], sizes = [1, 256], strides = [1, 1]} : vector<2x256xf32> to vector<1x256xf32>
    %196 = vector.extract_strided_slice %189 {offsets = [0, 0], sizes = [1, 256], strides = [1, 1]} : vector<2x256xf32> to vector<1x256xf32>
    %197 = vector.extract_strided_slice %189 {offsets = [1, 0], sizes = [1, 256], strides = [1, 1]} : vector<2x256xf32> to vector<1x256xf32>
    %c0_59 = arith.constant 0 : index
    %c0_60 = arith.constant 0 : index
    %198 = memref.load %arg4[%c0_59, %c0_60] : memref<8x8xf32, #tpu.memory_space<smem>>
    %199 = vector.broadcast %198 : f32 to vector<1x256xf32>
    %200 = arith.mulf %190, %199 : vector<1x256xf32>
    %c1_61 = arith.constant 1 : index
    %c0_62 = arith.constant 0 : index
    %201 = memref.load %arg4[%c1_61, %c0_62] : memref<8x8xf32, #tpu.memory_space<smem>>
    %202 = vector.broadcast %201 : f32 to vector<1x256xf32>
    %203 = arith.mulf %191, %202 : vector<1x256xf32>
    %204 = arith.addf %200, %203 : vector<1x256xf32>
    %c2_63 = arith.constant 2 : index
    %c0_64 = arith.constant 0 : index
    %205 = memref.load %arg4[%c2_63, %c0_64] : memref<8x8xf32, #tpu.memory_space<smem>>
    %206 = vector.broadcast %205 : f32 to vector<1x256xf32>
    %207 = arith.mulf %192, %206 : vector<1x256xf32>
    %208 = arith.addf %204, %207 : vector<1x256xf32>
    %c3_65 = arith.constant 3 : index
    %c0_66 = arith.constant 0 : index
    %209 = memref.load %arg4[%c3_65, %c0_66] : memref<8x8xf32, #tpu.memory_space<smem>>
    %210 = vector.broadcast %209 : f32 to vector<1x256xf32>
    %211 = arith.mulf %193, %210 : vector<1x256xf32>
    %212 = arith.addf %208, %211 : vector<1x256xf32>
    %c4 = arith.constant 4 : index
    %c0_67 = arith.constant 0 : index
    %213 = memref.load %arg4[%c4, %c0_67] : memref<8x8xf32, #tpu.memory_space<smem>>
    %214 = vector.broadcast %213 : f32 to vector<1x256xf32>
    %215 = arith.mulf %194, %214 : vector<1x256xf32>
    %216 = arith.addf %212, %215 : vector<1x256xf32>
    %c5 = arith.constant 5 : index
    %c0_68 = arith.constant 0 : index
    %217 = memref.load %arg4[%c5, %c0_68] : memref<8x8xf32, #tpu.memory_space<smem>>
    %218 = vector.broadcast %217 : f32 to vector<1x256xf32>
    %219 = arith.mulf %195, %218 : vector<1x256xf32>
    %220 = arith.addf %216, %219 : vector<1x256xf32>
    %c6 = arith.constant 6 : index
    %c0_69 = arith.constant 0 : index
    %221 = memref.load %arg4[%c6, %c0_69] : memref<8x8xf32, #tpu.memory_space<smem>>
    %222 = vector.broadcast %221 : f32 to vector<1x256xf32>
    %223 = arith.mulf %196, %222 : vector<1x256xf32>
    %224 = arith.addf %220, %223 : vector<1x256xf32>
    %c7 = arith.constant 7 : index
    %c0_70 = arith.constant 0 : index
    %225 = memref.load %arg4[%c7, %c0_70] : memref<8x8xf32, #tpu.memory_space<smem>>
    %226 = vector.broadcast %225 : f32 to vector<1x256xf32>
    %227 = arith.mulf %197, %226 : vector<1x256xf32>
    %228 = arith.addf %224, %227 : vector<1x256xf32>
    %c0_71 = arith.constant 0 : index
    %229 = memref.load %arg5[%c0_71] : memref<8xf32, #tpu.memory_space<smem>>
    %230 = vector.broadcast %229 : f32 to vector<1x256xf32>
    %231 = arith.addf %228, %230 : vector<1x256xf32>
    %c0_72 = arith.constant 0 : index
    %c1_73 = arith.constant 1 : index
    %232 = memref.load %arg4[%c0_72, %c1_73] : memref<8x8xf32, #tpu.memory_space<smem>>
    %233 = vector.broadcast %232 : f32 to vector<1x256xf32>
    %234 = arith.mulf %190, %233 : vector<1x256xf32>
    %c1_74 = arith.constant 1 : index
    %c1_75 = arith.constant 1 : index
    %235 = memref.load %arg4[%c1_74, %c1_75] : memref<8x8xf32, #tpu.memory_space<smem>>
    %236 = vector.broadcast %235 : f32 to vector<1x256xf32>
    %237 = arith.mulf %191, %236 : vector<1x256xf32>
    %238 = arith.addf %234, %237 : vector<1x256xf32>
    %c2_76 = arith.constant 2 : index
    %c1_77 = arith.constant 1 : index
    %239 = memref.load %arg4[%c2_76, %c1_77] : memref<8x8xf32, #tpu.memory_space<smem>>
    %240 = vector.broadcast %239 : f32 to vector<1x256xf32>
    %241 = arith.mulf %192, %240 : vector<1x256xf32>
    %242 = arith.addf %238, %241 : vector<1x256xf32>
    %c3_78 = arith.constant 3 : index
    %c1_79 = arith.constant 1 : index
    %243 = memref.load %arg4[%c3_78, %c1_79] : memref<8x8xf32, #tpu.memory_space<smem>>
    %244 = vector.broadcast %243 : f32 to vector<1x256xf32>
    %245 = arith.mulf %193, %244 : vector<1x256xf32>
    %246 = arith.addf %242, %245 : vector<1x256xf32>
    %c4_80 = arith.constant 4 : index
    %c1_81 = arith.constant 1 : index
    %247 = memref.load %arg4[%c4_80, %c1_81] : memref<8x8xf32, #tpu.memory_space<smem>>
    %248 = vector.broadcast %247 : f32 to vector<1x256xf32>
    %249 = arith.mulf %194, %248 : vector<1x256xf32>
    %250 = arith.addf %246, %249 : vector<1x256xf32>
    %c5_82 = arith.constant 5 : index
    %c1_83 = arith.constant 1 : index
    %251 = memref.load %arg4[%c5_82, %c1_83] : memref<8x8xf32, #tpu.memory_space<smem>>
    %252 = vector.broadcast %251 : f32 to vector<1x256xf32>
    %253 = arith.mulf %195, %252 : vector<1x256xf32>
    %254 = arith.addf %250, %253 : vector<1x256xf32>
    %c6_84 = arith.constant 6 : index
    %c1_85 = arith.constant 1 : index
    %255 = memref.load %arg4[%c6_84, %c1_85] : memref<8x8xf32, #tpu.memory_space<smem>>
    %256 = vector.broadcast %255 : f32 to vector<1x256xf32>
    %257 = arith.mulf %196, %256 : vector<1x256xf32>
    %258 = arith.addf %254, %257 : vector<1x256xf32>
    %c7_86 = arith.constant 7 : index
    %c1_87 = arith.constant 1 : index
    %259 = memref.load %arg4[%c7_86, %c1_87] : memref<8x8xf32, #tpu.memory_space<smem>>
    %260 = vector.broadcast %259 : f32 to vector<1x256xf32>
    %261 = arith.mulf %197, %260 : vector<1x256xf32>
    %262 = arith.addf %258, %261 : vector<1x256xf32>
    %c1_88 = arith.constant 1 : index
    %263 = memref.load %arg5[%c1_88] : memref<8xf32, #tpu.memory_space<smem>>
    %264 = vector.broadcast %263 : f32 to vector<1x256xf32>
    %265 = arith.addf %262, %264 : vector<1x256xf32>
    %c0_89 = arith.constant 0 : index
    %c2_90 = arith.constant 2 : index
    %266 = memref.load %arg4[%c0_89, %c2_90] : memref<8x8xf32, #tpu.memory_space<smem>>
    %267 = vector.broadcast %266 : f32 to vector<1x256xf32>
    %268 = arith.mulf %190, %267 : vector<1x256xf32>
    %c1_91 = arith.constant 1 : index
    %c2_92 = arith.constant 2 : index
    %269 = memref.load %arg4[%c1_91, %c2_92] : memref<8x8xf32, #tpu.memory_space<smem>>
    %270 = vector.broadcast %269 : f32 to vector<1x256xf32>
    %271 = arith.mulf %191, %270 : vector<1x256xf32>
    %272 = arith.addf %268, %271 : vector<1x256xf32>
    %c2_93 = arith.constant 2 : index
    %c2_94 = arith.constant 2 : index
    %273 = memref.load %arg4[%c2_93, %c2_94] : memref<8x8xf32, #tpu.memory_space<smem>>
    %274 = vector.broadcast %273 : f32 to vector<1x256xf32>
    %275 = arith.mulf %192, %274 : vector<1x256xf32>
    %276 = arith.addf %272, %275 : vector<1x256xf32>
    %c3_95 = arith.constant 3 : index
    %c2_96 = arith.constant 2 : index
    %277 = memref.load %arg4[%c3_95, %c2_96] : memref<8x8xf32, #tpu.memory_space<smem>>
    %278 = vector.broadcast %277 : f32 to vector<1x256xf32>
    %279 = arith.mulf %193, %278 : vector<1x256xf32>
    %280 = arith.addf %276, %279 : vector<1x256xf32>
    %c4_97 = arith.constant 4 : index
    %c2_98 = arith.constant 2 : index
    %281 = memref.load %arg4[%c4_97, %c2_98] : memref<8x8xf32, #tpu.memory_space<smem>>
    %282 = vector.broadcast %281 : f32 to vector<1x256xf32>
    %283 = arith.mulf %194, %282 : vector<1x256xf32>
    %284 = arith.addf %280, %283 : vector<1x256xf32>
    %c5_99 = arith.constant 5 : index
    %c2_100 = arith.constant 2 : index
    %285 = memref.load %arg4[%c5_99, %c2_100] : memref<8x8xf32, #tpu.memory_space<smem>>
    %286 = vector.broadcast %285 : f32 to vector<1x256xf32>
    %287 = arith.mulf %195, %286 : vector<1x256xf32>
    %288 = arith.addf %284, %287 : vector<1x256xf32>
    %c6_101 = arith.constant 6 : index
    %c2_102 = arith.constant 2 : index
    %289 = memref.load %arg4[%c6_101, %c2_102] : memref<8x8xf32, #tpu.memory_space<smem>>
    %290 = vector.broadcast %289 : f32 to vector<1x256xf32>
    %291 = arith.mulf %196, %290 : vector<1x256xf32>
    %292 = arith.addf %288, %291 : vector<1x256xf32>
    %c7_103 = arith.constant 7 : index
    %c2_104 = arith.constant 2 : index
    %293 = memref.load %arg4[%c7_103, %c2_104] : memref<8x8xf32, #tpu.memory_space<smem>>
    %294 = vector.broadcast %293 : f32 to vector<1x256xf32>
    %295 = arith.mulf %197, %294 : vector<1x256xf32>
    %296 = arith.addf %292, %295 : vector<1x256xf32>
    %c2_105 = arith.constant 2 : index
    %297 = memref.load %arg5[%c2_105] : memref<8xf32, #tpu.memory_space<smem>>
    %298 = vector.broadcast %297 : f32 to vector<1x256xf32>
    %299 = arith.addf %296, %298 : vector<1x256xf32>
    %c0_106 = arith.constant 0 : index
    %c3_107 = arith.constant 3 : index
    %300 = memref.load %arg4[%c0_106, %c3_107] : memref<8x8xf32, #tpu.memory_space<smem>>
    %301 = vector.broadcast %300 : f32 to vector<1x256xf32>
    %302 = arith.mulf %190, %301 : vector<1x256xf32>
    %c1_108 = arith.constant 1 : index
    %c3_109 = arith.constant 3 : index
    %303 = memref.load %arg4[%c1_108, %c3_109] : memref<8x8xf32, #tpu.memory_space<smem>>
    %304 = vector.broadcast %303 : f32 to vector<1x256xf32>
    %305 = arith.mulf %191, %304 : vector<1x256xf32>
    %306 = arith.addf %302, %305 : vector<1x256xf32>
    %c2_110 = arith.constant 2 : index
    %c3_111 = arith.constant 3 : index
    %307 = memref.load %arg4[%c2_110, %c3_111] : memref<8x8xf32, #tpu.memory_space<smem>>
    %308 = vector.broadcast %307 : f32 to vector<1x256xf32>
    %309 = arith.mulf %192, %308 : vector<1x256xf32>
    %310 = arith.addf %306, %309 : vector<1x256xf32>
    %c3_112 = arith.constant 3 : index
    %c3_113 = arith.constant 3 : index
    %311 = memref.load %arg4[%c3_112, %c3_113] : memref<8x8xf32, #tpu.memory_space<smem>>
    %312 = vector.broadcast %311 : f32 to vector<1x256xf32>
    %313 = arith.mulf %193, %312 : vector<1x256xf32>
    %314 = arith.addf %310, %313 : vector<1x256xf32>
    %c4_114 = arith.constant 4 : index
    %c3_115 = arith.constant 3 : index
    %315 = memref.load %arg4[%c4_114, %c3_115] : memref<8x8xf32, #tpu.memory_space<smem>>
    %316 = vector.broadcast %315 : f32 to vector<1x256xf32>
    %317 = arith.mulf %194, %316 : vector<1x256xf32>
    %318 = arith.addf %314, %317 : vector<1x256xf32>
    %c5_116 = arith.constant 5 : index
    %c3_117 = arith.constant 3 : index
    %319 = memref.load %arg4[%c5_116, %c3_117] : memref<8x8xf32, #tpu.memory_space<smem>>
    %320 = vector.broadcast %319 : f32 to vector<1x256xf32>
    %321 = arith.mulf %195, %320 : vector<1x256xf32>
    %322 = arith.addf %318, %321 : vector<1x256xf32>
    %c6_118 = arith.constant 6 : index
    %c3_119 = arith.constant 3 : index
    %323 = memref.load %arg4[%c6_118, %c3_119] : memref<8x8xf32, #tpu.memory_space<smem>>
    %324 = vector.broadcast %323 : f32 to vector<1x256xf32>
    %325 = arith.mulf %196, %324 : vector<1x256xf32>
    %326 = arith.addf %322, %325 : vector<1x256xf32>
    %c7_120 = arith.constant 7 : index
    %c3_121 = arith.constant 3 : index
    %327 = memref.load %arg4[%c7_120, %c3_121] : memref<8x8xf32, #tpu.memory_space<smem>>
    %328 = vector.broadcast %327 : f32 to vector<1x256xf32>
    %329 = arith.mulf %197, %328 : vector<1x256xf32>
    %330 = arith.addf %326, %329 : vector<1x256xf32>
    %c3_122 = arith.constant 3 : index
    %331 = memref.load %arg5[%c3_122] : memref<8xf32, #tpu.memory_space<smem>>
    %332 = vector.broadcast %331 : f32 to vector<1x256xf32>
    %333 = arith.addf %330, %332 : vector<1x256xf32>
    %c0_123 = arith.constant 0 : index
    %c4_124 = arith.constant 4 : index
    %334 = memref.load %arg4[%c0_123, %c4_124] : memref<8x8xf32, #tpu.memory_space<smem>>
    %335 = vector.broadcast %334 : f32 to vector<1x256xf32>
    %336 = arith.mulf %190, %335 : vector<1x256xf32>
    %c1_125 = arith.constant 1 : index
    %c4_126 = arith.constant 4 : index
    %337 = memref.load %arg4[%c1_125, %c4_126] : memref<8x8xf32, #tpu.memory_space<smem>>
    %338 = vector.broadcast %337 : f32 to vector<1x256xf32>
    %339 = arith.mulf %191, %338 : vector<1x256xf32>
    %340 = arith.addf %336, %339 : vector<1x256xf32>
    %c2_127 = arith.constant 2 : index
    %c4_128 = arith.constant 4 : index
    %341 = memref.load %arg4[%c2_127, %c4_128] : memref<8x8xf32, #tpu.memory_space<smem>>
    %342 = vector.broadcast %341 : f32 to vector<1x256xf32>
    %343 = arith.mulf %192, %342 : vector<1x256xf32>
    %344 = arith.addf %340, %343 : vector<1x256xf32>
    %c3_129 = arith.constant 3 : index
    %c4_130 = arith.constant 4 : index
    %345 = memref.load %arg4[%c3_129, %c4_130] : memref<8x8xf32, #tpu.memory_space<smem>>
    %346 = vector.broadcast %345 : f32 to vector<1x256xf32>
    %347 = arith.mulf %193, %346 : vector<1x256xf32>
    %348 = arith.addf %344, %347 : vector<1x256xf32>
    %c4_131 = arith.constant 4 : index
    %c4_132 = arith.constant 4 : index
    %349 = memref.load %arg4[%c4_131, %c4_132] : memref<8x8xf32, #tpu.memory_space<smem>>
    %350 = vector.broadcast %349 : f32 to vector<1x256xf32>
    %351 = arith.mulf %194, %350 : vector<1x256xf32>
    %352 = arith.addf %348, %351 : vector<1x256xf32>
    %c5_133 = arith.constant 5 : index
    %c4_134 = arith.constant 4 : index
    %353 = memref.load %arg4[%c5_133, %c4_134] : memref<8x8xf32, #tpu.memory_space<smem>>
    %354 = vector.broadcast %353 : f32 to vector<1x256xf32>
    %355 = arith.mulf %195, %354 : vector<1x256xf32>
    %356 = arith.addf %352, %355 : vector<1x256xf32>
    %c6_135 = arith.constant 6 : index
    %c4_136 = arith.constant 4 : index
    %357 = memref.load %arg4[%c6_135, %c4_136] : memref<8x8xf32, #tpu.memory_space<smem>>
    %358 = vector.broadcast %357 : f32 to vector<1x256xf32>
    %359 = arith.mulf %196, %358 : vector<1x256xf32>
    %360 = arith.addf %356, %359 : vector<1x256xf32>
    %c7_137 = arith.constant 7 : index
    %c4_138 = arith.constant 4 : index
    %361 = memref.load %arg4[%c7_137, %c4_138] : memref<8x8xf32, #tpu.memory_space<smem>>
    %362 = vector.broadcast %361 : f32 to vector<1x256xf32>
    %363 = arith.mulf %197, %362 : vector<1x256xf32>
    %364 = arith.addf %360, %363 : vector<1x256xf32>
    %c4_139 = arith.constant 4 : index
    %365 = memref.load %arg5[%c4_139] : memref<8xf32, #tpu.memory_space<smem>>
    %366 = vector.broadcast %365 : f32 to vector<1x256xf32>
    %367 = arith.addf %364, %366 : vector<1x256xf32>
    %c0_140 = arith.constant 0 : index
    %c5_141 = arith.constant 5 : index
    %368 = memref.load %arg4[%c0_140, %c5_141] : memref<8x8xf32, #tpu.memory_space<smem>>
    %369 = vector.broadcast %368 : f32 to vector<1x256xf32>
    %370 = arith.mulf %190, %369 : vector<1x256xf32>
    %c1_142 = arith.constant 1 : index
    %c5_143 = arith.constant 5 : index
    %371 = memref.load %arg4[%c1_142, %c5_143] : memref<8x8xf32, #tpu.memory_space<smem>>
    %372 = vector.broadcast %371 : f32 to vector<1x256xf32>
    %373 = arith.mulf %191, %372 : vector<1x256xf32>
    %374 = arith.addf %370, %373 : vector<1x256xf32>
    %c2_144 = arith.constant 2 : index
    %c5_145 = arith.constant 5 : index
    %375 = memref.load %arg4[%c2_144, %c5_145] : memref<8x8xf32, #tpu.memory_space<smem>>
    %376 = vector.broadcast %375 : f32 to vector<1x256xf32>
    %377 = arith.mulf %192, %376 : vector<1x256xf32>
    %378 = arith.addf %374, %377 : vector<1x256xf32>
    %c3_146 = arith.constant 3 : index
    %c5_147 = arith.constant 5 : index
    %379 = memref.load %arg4[%c3_146, %c5_147] : memref<8x8xf32, #tpu.memory_space<smem>>
    %380 = vector.broadcast %379 : f32 to vector<1x256xf32>
    %381 = arith.mulf %193, %380 : vector<1x256xf32>
    %382 = arith.addf %378, %381 : vector<1x256xf32>
    %c4_148 = arith.constant 4 : index
    %c5_149 = arith.constant 5 : index
    %383 = memref.load %arg4[%c4_148, %c5_149] : memref<8x8xf32, #tpu.memory_space<smem>>
    %384 = vector.broadcast %383 : f32 to vector<1x256xf32>
    %385 = arith.mulf %194, %384 : vector<1x256xf32>
    %386 = arith.addf %382, %385 : vector<1x256xf32>
    %c5_150 = arith.constant 5 : index
    %c5_151 = arith.constant 5 : index
    %387 = memref.load %arg4[%c5_150, %c5_151] : memref<8x8xf32, #tpu.memory_space<smem>>
    %388 = vector.broadcast %387 : f32 to vector<1x256xf32>
    %389 = arith.mulf %195, %388 : vector<1x256xf32>
    %390 = arith.addf %386, %389 : vector<1x256xf32>
    %c6_152 = arith.constant 6 : index
    %c5_153 = arith.constant 5 : index
    %391 = memref.load %arg4[%c6_152, %c5_153] : memref<8x8xf32, #tpu.memory_space<smem>>
    %392 = vector.broadcast %391 : f32 to vector<1x256xf32>
    %393 = arith.mulf %196, %392 : vector<1x256xf32>
    %394 = arith.addf %390, %393 : vector<1x256xf32>
    %c7_154 = arith.constant 7 : index
    %c5_155 = arith.constant 5 : index
    %395 = memref.load %arg4[%c7_154, %c5_155] : memref<8x8xf32, #tpu.memory_space<smem>>
    %396 = vector.broadcast %395 : f32 to vector<1x256xf32>
    %397 = arith.mulf %197, %396 : vector<1x256xf32>
    %398 = arith.addf %394, %397 : vector<1x256xf32>
    %c5_156 = arith.constant 5 : index
    %399 = memref.load %arg5[%c5_156] : memref<8xf32, #tpu.memory_space<smem>>
    %400 = vector.broadcast %399 : f32 to vector<1x256xf32>
    %401 = arith.addf %398, %400 : vector<1x256xf32>
    %c0_157 = arith.constant 0 : index
    %c6_158 = arith.constant 6 : index
    %402 = memref.load %arg4[%c0_157, %c6_158] : memref<8x8xf32, #tpu.memory_space<smem>>
    %403 = vector.broadcast %402 : f32 to vector<1x256xf32>
    %404 = arith.mulf %190, %403 : vector<1x256xf32>
    %c1_159 = arith.constant 1 : index
    %c6_160 = arith.constant 6 : index
    %405 = memref.load %arg4[%c1_159, %c6_160] : memref<8x8xf32, #tpu.memory_space<smem>>
    %406 = vector.broadcast %405 : f32 to vector<1x256xf32>
    %407 = arith.mulf %191, %406 : vector<1x256xf32>
    %408 = arith.addf %404, %407 : vector<1x256xf32>
    %c2_161 = arith.constant 2 : index
    %c6_162 = arith.constant 6 : index
    %409 = memref.load %arg4[%c2_161, %c6_162] : memref<8x8xf32, #tpu.memory_space<smem>>
    %410 = vector.broadcast %409 : f32 to vector<1x256xf32>
    %411 = arith.mulf %192, %410 : vector<1x256xf32>
    %412 = arith.addf %408, %411 : vector<1x256xf32>
    %c3_163 = arith.constant 3 : index
    %c6_164 = arith.constant 6 : index
    %413 = memref.load %arg4[%c3_163, %c6_164] : memref<8x8xf32, #tpu.memory_space<smem>>
    %414 = vector.broadcast %413 : f32 to vector<1x256xf32>
    %415 = arith.mulf %193, %414 : vector<1x256xf32>
    %416 = arith.addf %412, %415 : vector<1x256xf32>
    %c4_165 = arith.constant 4 : index
    %c6_166 = arith.constant 6 : index
    %417 = memref.load %arg4[%c4_165, %c6_166] : memref<8x8xf32, #tpu.memory_space<smem>>
    %418 = vector.broadcast %417 : f32 to vector<1x256xf32>
    %419 = arith.mulf %194, %418 : vector<1x256xf32>
    %420 = arith.addf %416, %419 : vector<1x256xf32>
    %c5_167 = arith.constant 5 : index
    %c6_168 = arith.constant 6 : index
    %421 = memref.load %arg4[%c5_167, %c6_168] : memref<8x8xf32, #tpu.memory_space<smem>>
    %422 = vector.broadcast %421 : f32 to vector<1x256xf32>
    %423 = arith.mulf %195, %422 : vector<1x256xf32>
    %424 = arith.addf %420, %423 : vector<1x256xf32>
    %c6_169 = arith.constant 6 : index
    %c6_170 = arith.constant 6 : index
    %425 = memref.load %arg4[%c6_169, %c6_170] : memref<8x8xf32, #tpu.memory_space<smem>>
    %426 = vector.broadcast %425 : f32 to vector<1x256xf32>
    %427 = arith.mulf %196, %426 : vector<1x256xf32>
    %428 = arith.addf %424, %427 : vector<1x256xf32>
    %c7_171 = arith.constant 7 : index
    %c6_172 = arith.constant 6 : index
    %429 = memref.load %arg4[%c7_171, %c6_172] : memref<8x8xf32, #tpu.memory_space<smem>>
    %430 = vector.broadcast %429 : f32 to vector<1x256xf32>
    %431 = arith.mulf %197, %430 : vector<1x256xf32>
    %432 = arith.addf %428, %431 : vector<1x256xf32>
    %c6_173 = arith.constant 6 : index
    %433 = memref.load %arg5[%c6_173] : memref<8xf32, #tpu.memory_space<smem>>
    %434 = vector.broadcast %433 : f32 to vector<1x256xf32>
    %435 = arith.addf %432, %434 : vector<1x256xf32>
    %c0_174 = arith.constant 0 : index
    %c7_175 = arith.constant 7 : index
    %436 = memref.load %arg4[%c0_174, %c7_175] : memref<8x8xf32, #tpu.memory_space<smem>>
    %437 = vector.broadcast %436 : f32 to vector<1x256xf32>
    %438 = arith.mulf %190, %437 : vector<1x256xf32>
    %c1_176 = arith.constant 1 : index
    %c7_177 = arith.constant 7 : index
    %439 = memref.load %arg4[%c1_176, %c7_177] : memref<8x8xf32, #tpu.memory_space<smem>>
    %440 = vector.broadcast %439 : f32 to vector<1x256xf32>
    %441 = arith.mulf %191, %440 : vector<1x256xf32>
    %442 = arith.addf %438, %441 : vector<1x256xf32>
    %c2_178 = arith.constant 2 : index
    %c7_179 = arith.constant 7 : index
    %443 = memref.load %arg4[%c2_178, %c7_179] : memref<8x8xf32, #tpu.memory_space<smem>>
    %444 = vector.broadcast %443 : f32 to vector<1x256xf32>
    %445 = arith.mulf %192, %444 : vector<1x256xf32>
    %446 = arith.addf %442, %445 : vector<1x256xf32>
    %c3_180 = arith.constant 3 : index
    %c7_181 = arith.constant 7 : index
    %447 = memref.load %arg4[%c3_180, %c7_181] : memref<8x8xf32, #tpu.memory_space<smem>>
    %448 = vector.broadcast %447 : f32 to vector<1x256xf32>
    %449 = arith.mulf %193, %448 : vector<1x256xf32>
    %450 = arith.addf %446, %449 : vector<1x256xf32>
    %c4_182 = arith.constant 4 : index
    %c7_183 = arith.constant 7 : index
    %451 = memref.load %arg4[%c4_182, %c7_183] : memref<8x8xf32, #tpu.memory_space<smem>>
    %452 = vector.broadcast %451 : f32 to vector<1x256xf32>
    %453 = arith.mulf %194, %452 : vector<1x256xf32>
    %454 = arith.addf %450, %453 : vector<1x256xf32>
    %c5_184 = arith.constant 5 : index
    %c7_185 = arith.constant 7 : index
    %455 = memref.load %arg4[%c5_184, %c7_185] : memref<8x8xf32, #tpu.memory_space<smem>>
    %456 = vector.broadcast %455 : f32 to vector<1x256xf32>
    %457 = arith.mulf %195, %456 : vector<1x256xf32>
    %458 = arith.addf %454, %457 : vector<1x256xf32>
    %c6_186 = arith.constant 6 : index
    %c7_187 = arith.constant 7 : index
    %459 = memref.load %arg4[%c6_186, %c7_187] : memref<8x8xf32, #tpu.memory_space<smem>>
    %460 = vector.broadcast %459 : f32 to vector<1x256xf32>
    %461 = arith.mulf %196, %460 : vector<1x256xf32>
    %462 = arith.addf %458, %461 : vector<1x256xf32>
    %c7_188 = arith.constant 7 : index
    %c7_189 = arith.constant 7 : index
    %463 = memref.load %arg4[%c7_188, %c7_189] : memref<8x8xf32, #tpu.memory_space<smem>>
    %464 = vector.broadcast %463 : f32 to vector<1x256xf32>
    %465 = arith.mulf %197, %464 : vector<1x256xf32>
    %466 = arith.addf %462, %465 : vector<1x256xf32>
    %c7_190 = arith.constant 7 : index
    %467 = memref.load %arg5[%c7_190] : memref<8xf32, #tpu.memory_space<smem>>
    %468 = vector.broadcast %467 : f32 to vector<1x256xf32>
    %469 = arith.addf %466, %468 : vector<1x256xf32>
    %470 = tpu.concatenate %231, %265, %299, %333, %367, %401, %435, %469 in 0 : vector<1x256xf32>, vector<1x256xf32>, vector<1x256xf32>, vector<1x256xf32>, vector<1x256xf32>, vector<1x256xf32>, vector<1x256xf32>, vector<1x256xf32> -> vector<8x256xf32>
    %cst_191 = arith.constant 0.000000e+00 : f32
    %471 = vector.broadcast %cst_191 : f32 to vector<8x256xf32>
    %472 = arith.subf %471, %470 : vector<8x256xf32>
    %473 = math.exp %472 : vector<8x256xf32>
    %cst_192 = arith.constant 1.000000e+00 : f32
    %474 = vector.broadcast %cst_192 : f32 to vector<8x256xf32>
    %475 = arith.addf %474, %473 : vector<8x256xf32>
    %cst_193 = arith.constant 1.000000e+00 : f32
    %476 = vector.broadcast %cst_193 : f32 to vector<8x256xf32>
    %477 = arith.divf %476, %475 : vector<8x256xf32>
    %478 = arith.mulf %470, %477 : vector<8x256xf32>
    %c0_194 = arith.constant 0 : index
    %c0_195 = arith.constant 0 : index
    %c0_196 = arith.constant 0 : index
    %479 = vector.load %arg6[%c0_194, %c0_195, %c0_196] : memref<1x8x256xf32, #tpu.memory_space<vmem>>, vector<1x8x256xf32>
    %480 = vector.shape_cast %479 : vector<1x8x256xf32> to vector<8x256xf32>
    %481 = vector.shape_cast %478 : vector<8x256xf32> to vector<1x8x256xf32>
    tpu.vector_store %arg6[%c0_194, %c0_195, %c0_196], %481 {strides = array<i32>} : memref<1x8x256xf32, #tpu.memory_space<vmem>>, vector<1x8x256xf32>,
    return
  }
  func.func @transform_0(%arg0: i32) -> (i32, i32, i32) {
    %c0_i32 = arith.constant 0 : i32
    %c0_i32_0 = arith.constant 0 : i32
    %c0_i32_1 = arith.constant 0 : i32
    return %arg0, %c0_i32, %c0_i32_0 : i32, i32, i32
  }
  func.func @transform_1(%arg0: i32) -> (i32, i32) {
    %c0_i32 = arith.constant 0 : i32
    %c0_i32_0 = arith.constant 0 : i32
    %c0_i32_1 = arith.constant 0 : i32
    return %c0_i32, %c0_i32_0 : i32, i32
  }
  func.func @transform_2(%arg0: i32) -> i32 {
    %c0_i32 = arith.constant 0 : i32
    %c0_i32_0 = arith.constant 0 : i32
    return %c0_i32 : i32
  }
  func.func @transform_3(%arg0: i32) -> (i32, i32) {
    %c0_i32 = arith.constant 0 : i32
    %c0_i32_0 = arith.constant 0 : i32
    %c0_i32_1 = arith.constant 0 : i32
    return %c0_i32, %c0_i32_0 : i32, i32
  }
  func.func @transform_4(%arg0: i32) -> i32 {
    %c0_i32 = arith.constant 0 : i32
    %c0_i32_0 = arith.constant 0 : i32
    return %c0_i32 : i32
  }
  func.func @transform_5(%arg0: i32) -> (i32, i32, i32) {
    %c0_i32 = arith.constant 0 : i32
    %c0_i32_0 = arith.constant 0 : i32
    %c0_i32_1 = arith.constant 0 : i32
    return %arg0, %c0_i32, %c0_i32_0 : i32, i32, i32
  }
}

</mosaic_0001>

<llo_original>
// kernel: tpu_custom_call.1
$region0: #{tpu_custom_call.1}
  #allocation0 [shape = 'u32[]', space=smem, size = 0x4, offset = 0x4, fixed_abs, tag = 'smem constant byte address 0x4 - core index']
  #allocation1 [shape = 'u32[144,128]{1,0:T(1,128)}', space=vmem, size = 0x12000, scoped, tag = 'internal scratch']
  %s0 = inlined_call_operand.hbm [shape: f32[2,4,256], index: 0, kind: input, shape index: {}]
  %s1 = inlined_call_operand.vmem [shape: f32[4,2], index: 1, kind: input, shape index: {}]
  %s2 = inlined_call_operand.vmem [shape: f32[2], index: 2, kind: input, shape index: {}]
  %s3 = inlined_call_operand.vmem [shape: f32[8,8], index: 3, kind: input, shape index: {}]
  %s4 = inlined_call_operand.vmem [shape: f32[8], index: 4, kind: input, shape index: {}]
  %s5 = inlined_call_operand.hbm [shape: f32[2,8,256], index: 5, kind: output, shape index: {}]
  %s6 = sld [smem:[#allocation0]]
  $region73: #{tpu_custom_call.1} parent=0
    _
  %s8 = ssub.s32 1, %s6
  %s9 = scalar_select 0, %s8, %s6
  $region1: #{tpu_custom_call.1} parent=0
    #allocation2 [shape = 'u8[8192]{0}', space=vmem, size = 0x2000, scoped, tag = 'input window, operand 0']
    #allocation3 [shape = 's32[2]{0}', space=sflag, size = 0x8, scoped, tag = 'scoped memory for tpu_custom_call.1']
    #allocation4 [shape = 's32[2]{0}', space=sflag, size = 0x8, scoped, tag = 'scoped memory for tpu_custom_call.1']
    #allocation5 [shape = 's32[2]{0}', space=sflag, size = 0x8, scoped, tag = 'scoped memory for tpu_custom_call.1']
    #allocation6 [shape = 'u8[2048]{0}', space=smem, size = 0x800, scoped, tag = 'input window, operand 1, single buffered']
    #allocation7 [shape = 'u8[512]{0}', space=smem, size = 0x200, scoped, tag = 'input window, operand 2, single buffered']
    #allocation8 [shape = 's32[1]{0}', space=sflag, size = 0x4, scoped, tag = 'scoped memory for tpu_custom_call.1']
    #allocation9 [shape = 'u8[4096]{0}', space=smem, size = 0x1000, scoped, tag = 'input window, operand 3, single buffered']
    #allocation10 [shape = 'u8[512]{0}', space=smem, size = 0x200, scoped, tag = 'input window, operand 4, single buffered']
    #allocation11 [shape = 's32[1]{0}', space=sflag, size = 0x4, scoped, tag = 'scoped memory for tpu_custom_call.1']
    #allocation12 [shape = 'u8[16384]{0}', space=vmem, size = 0x4000, scoped, tag = 'output window, operand 0']
    %10 = vsyncpa [#allocation3], 0
    %s11 = scalar_lea.sflag [#allocation3], 1
    %12 = vsyncpa %s11, 0
    %13 = vsyncpa [#allocation5], 0
    %14 = vsyncpa [#allocation8], 0
    %15 = vsyncpa [#allocation11], 0
    %16 = vsyncpa [#allocation4], 0
    %s17 = scalar_lea.sflag [#allocation4], 1
    %18 = vsyncpa %s17, 0
    loop: start=0, step=1, limit=4
    $region2: #{tpu_custom_call.1} parent=1 // loop_pre_header
      _
    $region3: #{tpu_custom_call.1} parent=1 // loop_header
      %s20 = sphi 0, %s24
      %p21 = scmp.ge.s32.totalorder %s20, 4
      %s30 = sphi 0, %s32
      %s33 = sphi 0, %s30
      %s34 = sphi 0, %s33
      %s50 = sphi 0, %s34
      %s54 = sphi 0, %s54
      %s56 = sphi 0, %s54
      %s57 = sphi 0, %s56
      %s71 = sphi 0, %s57
      %s75 = sphi 0, %s75
      %s77 = sphi 0, %s75
      %s78 = sphi 0, %s77
      %s92 = sphi 0, %s78
      %s96 = sphi 0, %s96
      %s98 = sphi 0, %s96
      %s99 = sphi 0, %s98
      %s113 = sphi 0, %s99
      %s117 = sphi 0, %s117
      %s119 = sphi 0, %s117
      %s120 = sphi 0, %s119
      %s134 = sphi 0, %s120
      %s140 = sphi 0, %s142
      %s143 = sphi 0, %s140
      %s144 = sphi 0, %s143
      %s160 = sphi 0, %s144
    $region4: #{tpu_custom_call.1} parent=1 // loop_header_branch
      %23 = sbr.rel (%p21) target = $region8
    $region5: #{tpu_custom_call.1} parent=1 // loop_body
      %s25 = ssub.s32 %s20, 1
      %s26 = ssub.s32 %s20, 2
      %s27 = sadd.s32 %s20, 1
      %s28 = ssub.s32 %s20, %s27
      %p29 = scmp.eq.s32.totalorder %s28, 0
      %s31 = sadd.s32 %s30, 1
      %s32 = scalar_select %p29, %s30, %s31
      %p35 = pneg %p29
      %p36 = scmp.eq.s32.totalorder %s20, 1
      %p37 = por %p35, %p36
      %p38 = scmp.ne.s32.totalorder %s30, %s33
      %p39 = scmp.eq.s32.totalorder %s20, 0
      %p40 = por %p38, %p39
      %p41 = scmp.ne.s32.totalorder %s30, %s33
      %p42 = scmp.eq.s32.totalorder %s25, 1
      %p43 = por %p41, %p42
      %p44 = scmp.ne.s32.totalorder %s33, %s34
      %p45 = scmp.eq.s32.totalorder %s25, 0
      %p46 = por %p44, %p45
      %p47 = scmp.ne.s32.totalorder %s33, %s34
      %p48 = scmp.eq.s32.totalorder %s26, 1
      %p49 = por %p47, %p48
      %p51 = scmp.ne.s32.totalorder %s34, %s50
      %p52 = scmp.eq.s32.totalorder %s26, 0
      %p53 = por %p51, %p52
      %s55 = sadd.s32 %s54, 1
      %p58 = scmp.eq.s32.totalorder %s20, 1
      %p59 = scmp.ne.s32.totalorder %s54, %s56
      %p60 = scmp.eq.s32.totalorder %s20, 0
      %p61 = por %p59, %p60
      %p62 = scmp.ne.s32.totalorder %s54, %s56
      %p63 = scmp.eq.s32.totalorder %s25, 1
      %p64 = por %p62, %p63
      %p65 = scmp.ne.s32.totalorder %s56, %s57
      %p66 = scmp.eq.s32.totalorder %s25, 0
      %p67 = por %p65, %p66
      %p68 = scmp.ne.s32.totalorder %s56, %s57
      %p69 = scmp.eq.s32.totalorder %s26, 1
      %p70 = por %p68, %p69
      %p72 = scmp.ne.s32.totalorder %s57, %s71
      %p73 = scmp.eq.s32.totalorder %s26, 0
      %p74 = por %p72, %p73
      %s76 = sadd.s32 %s75, 1
      %p79 = scmp.eq.s32.totalorder %s20, 1
      %p80 = scmp.ne.s32.totalorder %s75, %s77
      %p81 = scmp.eq.s32.totalorder %s20, 0
      %p82 = por %p80, %p81
      %p83 = scmp.ne.s32.totalorder %s75, %s77
      %p84 = scmp.eq.s32.totalorder %s25, 1
      %p85 = por %p83, %p84
      %p86 = scmp.ne.s32.totalorder %s77, %s78
      %p87 = scmp.eq.s32.totalorder %s25, 0
      %p88 = por %p86, %p87
      %p89 = scmp.ne.s32.totalorder %s77, %s78
      %p90 = scmp.eq.s32.totalorder %s26, 1
      %p91 = por %p89, %p90
      %p93 = scmp.ne.s32.totalorder %s78, %s92
      %p94 = scmp.eq.s32.totalorder %s26, 0
      %p95 = por %p93, %p94
      %s97 = sadd.s32 %s96, 1
      %p100 = scmp.eq.s32.totalorder %s20, 1
      %p101 = scmp.ne.s32.totalorder %s96, %s98
      %p102 = scmp.eq.s32.totalorder %s20, 0
      %p103 = por %p101, %p102
      %p104 = scmp.ne.s32.totalorder %s96, %s98
      %p105 = scmp.eq.s32.totalorder %s25, 1
      %p106 = por %p104, %p105
      %p107 = scmp.ne.s32.totalorder %s98, %s99
      %p108 = scmp.eq.s32.totalorder %s25, 0
      %p109 = por %p107, %p108
      %p110 = scmp.ne.s32.totalorder %s98, %s99
      %p111 = scmp.eq.s32.totalorder %s26, 1
      %p112 = por %p110, %p111
      %p114 = scmp.ne.s32.totalorder %s99, %s113
      %p115 = scmp.eq.s32.totalorder %s26, 0
      %p116 = por %p114, %p115
      %s118 = sadd.s32 %s117, 1
      %p121 = scmp.eq.s32.totalorder %s20, 1
      %p122 = scmp.ne.s32.totalorder %s117, %s119
      %p123 = scmp.eq.s32.totalorder %s20, 0
      %p124 = por %p122, %p123
      %p125 = scmp.ne.s32.totalorder %s117, %s119
      %p126 = scmp.eq.s32.totalorder %s25, 1
      %p127 = por %p125, %p126
      %p128 = scmp.ne.s32.totalorder %s119, %s120
      %p129 = scmp.eq.s32.totalorder %s25, 0
      %p130 = por %p128, %p129
      %p131 = scmp.ne.s32.totalorder %s119, %s120
      %p132 = scmp.eq.s32.totalorder %s26, 1
      %p133 = por %p131, %p132
      %p135 = scmp.ne.s32.totalorder %s120, %s134
      %p136 = scmp.eq.s32.totalorder %s26, 0
      %p137 = por %p135, %p136
      %s138 = ssub.s32 %s20, %s27
      %p139 = scmp.eq.s32.totalorder %s138, 0
      %s141 = sadd.s32 %s140, 1
      %s142 = scalar_select %p139, %s140, %s141
      %p145 = pneg %p139
      %p146 = scmp.eq.s32.totalorder %s20, 1
      %p147 = por %p145, %p146
      %p148 = scmp.ne.s32.totalorder %s140, %s143
      %p149 = scmp.eq.s32.totalorder %s20, 0
      %p150 = por %p148, %p149
      %p151 = scmp.ne.s32.totalorder %s140, %s143
      %p152 = scmp.eq.s32.totalorder %s25, 1
      %p153 = por %p151, %p152
      %p154 = scmp.ne.s32.totalorder %s143, %s144
      %p155 = scmp.eq.s32.totalorder %s25, 0
      %p156 = por %p154, %p155
      %p157 = scmp.ne.s32.totalorder %s143, %s144
      %p158 = scmp.eq.s32.totalorder %s26, 1
      %p159 = por %p157, %p158
      %p161 = scmp.ne.s32.totalorder %s144, %s160
      %p162 = scmp.eq.s32.totalorder %s26, 0
      %p163 = por %p161, %p162
      %p164 = scmp.le.s32.totalorder 1, %s20
      %p165 = scmp.lt.s32.totalorder %s20, 3
      %p166 = pnand %p164, %p165
      %p167 = pneg %p166
      // Predicated region
      $region9: #{tpu_custom_call.1} parent=5 // pred_check
        _
      $region10: #{tpu_custom_call.1} parent=5 // pred_check_branch
        %169 = sbr.rel (%p166) target = $region12
      $region11: #{tpu_custom_call.1} parent=5 // pred_region
        %s170 = ssub.s32 %s20, 1
        // Predicated region
        $region13: #{tpu_custom_call.1} parent=11 // pred_check
          %p171 = pneg %p67
        $region14: #{tpu_custom_call.1} parent=11 // pred_check_branch
          %173 = sbr.rel (%p171) target = $region16
        $region15: #{tpu_custom_call.1} parent=11 // pred_region
          %s175 = ssub.s32 64, 64
          %176 = vsyncadd [#allocation5], %s175
          %s178 = sshll.u32 %s1, 4
          %s179 = int_to_ptr.vmem [resolvable:$true] %s178
          %181 = dma.vmem_to_smem %s179, 64, [#allocation6], [#allocation5]
        $region16: #{tpu_custom_call.1} parent=11 // pred_fallthru
          _
        // Predicated region
        $region17: #{tpu_custom_call.1} parent=11 // pred_check
          %p182 = pneg %p88
        $region18: #{tpu_custom_call.1} parent=11 // pred_check_branch
          %184 = sbr.rel (%p182) target = $region20
        $region19: #{tpu_custom_call.1} parent=11 // pred_region
          %s186 = ssub.s32 16, 16
          %187 = vsyncadd [#allocation8], %s186
          %s189 = sshll.u32 %s2, 4
          %s190 = int_to_ptr.vmem [resolvable:$true] %s189
          %192 = dma.vmem_to_smem %s190, 16, [#allocation7], [#allocation8]
        $region20: #{tpu_custom_call.1} parent=11 // pred_fallthru
          _
        // Predicated region
        $region21: #{tpu_custom_call.1} parent=11 // pred_check
          %p193 = pneg %p109
        $region22: #{tpu_custom_call.1} parent=11 // pred_check_branch
          %195 = sbr.rel (%p193) target = $region24
        $region23: #{tpu_custom_call.1} parent=11 // pred_region
          %s197 = ssub.s32 128, 128
          %198 = vsyncadd [#allocation8], %s197
          %s200 = sshll.u32 %s3, 4
          %s201 = int_to_ptr.vmem [resolvable:$true] %s200
          %203 = dma.vmem_to_smem %s201, 128, [#allocation9], [#allocation8]
        $region24: #{tpu_custom_call.1} parent=11 // pred_fallthru
          _
        // Predicated region
        $region25: #{tpu_custom_call.1} parent=11 // pred_check
          %p204 = pneg %p130
        $region26: #{tpu_custom_call.1} parent=11 // pred_check_branch
          %206 = sbr.rel (%p204) target = $region28
        $region27: #{tpu_custom_call.1} parent=11 // pred_region
          %s208 = ssub.s32 16, 16
          %209 = vsyncadd [#allocation11], %s208
          %s211 = sshll.u32 %s4, 4
          %s212 = int_to_ptr.vmem [resolvable:$true] %s211
          %214 = dma.vmem_to_smem %s212, 16, [#allocation10], [#allocation11]
        $region28: #{tpu_custom_call.1} parent=11 // pred_fallthru
          _
      $region12: #{tpu_custom_call.1} parent=5 // pred_fallthru
        _
      %p215 = scmp.lt.s32.totalorder %s20, 2
      // Predicated region
      $region29: #{tpu_custom_call.1} parent=5 // pred_check
        %p216 = pneg %p215
      $region30: #{tpu_custom_call.1} parent=5 // pred_check_branch
        %218 = sbr.rel (%p216) target = $region32
      $region31: #{tpu_custom_call.1} parent=5 // pred_region
        // Predicated region
        $region33: #{tpu_custom_call.1} parent=31 // pred_check
          %p219 = pneg %p40
        $region34: #{tpu_custom_call.1} parent=31 // pred_check_branch
          %221 = sbr.rel (%p219) target = $region36
        $region35: #{tpu_custom_call.1} parent=31 // pred_region
          %s222 = sand.u32 %s30, 1
          %s223 = scalar_lea.sflag [#allocation3], %s222
          %s224 = sand.u32 %s30, 1
          %s225 = smul.addr %s224, 8
          %s226 = scalar_lea.vmem [#allocation2], %s225
          %s228 = ssub.s32 128, 128
          %229 = vsyncadd %s223, %s228
          %s230 = smul.addr %s20, 2
          %s231 = smul.addr %s230, 64
          %s232 = scalar_lea.hbm %s0, %s231
          %s234 = sshll.u32 %s226, 4
          %s235 = int_to_ptr.vmem [resolvable:$true] %s234
          %237 = dma.hbm_to_vmem [thread:$0]  %s232, 128, %s235, %s223
        $region36: #{tpu_custom_call.1} parent=31 // pred_fallthru
          _
      $region32: #{tpu_custom_call.1} parent=5 // pred_fallthru
        _
      %p238 = scmp.le.s32.totalorder 1, %s20
      %p239 = scmp.lt.s32.totalorder %s20, 3
      %p240 = pnand %p238, %p239
      %p241 = pneg %p240
      // Predicated region
      $region37: #{tpu_custom_call.1} parent=5 // pred_check
        _
      $region38: #{tpu_custom_call.1} parent=5 // pred_check_branch
        %243 = sbr.rel (%p240) target = $region40
      $region39: #{tpu_custom_call.1} parent=5 // pred_region
        %s244 = ssub.s32 %s20, 1
        %s245 = sand.u32 %s33, 1
        %s246 = scalar_lea.sflag [#allocation3], %s245
        %s247 = sand.u32 %s33, 1
        %s248 = smul.addr %s247, 8
        %s249 = scalar_lea.vmem [#allocation2], %s248
        // Predicated region
        $region41: #{tpu_custom_call.1} parent=39 // pred_check
          %p250 = pneg %p46
        $region42: #{tpu_custom_call.1} parent=39 // pred_check_branch
          %252 = sbr.rel (%p250) target = $region44
        $region43: #{tpu_custom_call.1} parent=39 // pred_region
          %253 = dma.done %s246, 128
        $region44: #{tpu_custom_call.1} parent=39 // pred_fallthru
          _
        // Predicated region
        $region45: #{tpu_custom_call.1} parent=39 // pred_check
          %p254 = pneg %p67
        $region46: #{tpu_custom_call.1} parent=39 // pred_check_branch
          %256 = sbr.rel (%p254) target = $region48
        $region47: #{tpu_custom_call.1} parent=39 // pred_region
          %257 = dma.done [#allocation5], 64
        $region48: #{tpu_custom_call.1} parent=39 // pred_fallthru
          _
        // Predicated region
        $region49: #{tpu_custom_call.1} parent=39 // pred_check
          %p258 = pneg %p88
        $region50: #{tpu_custom_call.1} parent=39 // pred_check_branch
          %260 = sbr.rel (%p258) target = $region52
        $region51: #{tpu_custom_call.1} parent=39 // pred_region
          %261 = dma.done [#allocation8], 16
        $region52: #{tpu_custom_call.1} parent=39 // pred_fallthru
          _
        // Predicated region
        $region53: #{tpu_custom_call.1} parent=39 // pred_check
          %p262 = pneg %p109
        $region54: #{tpu_custom_call.1} parent=39 // pred_check_branch
          %264 = sbr.rel (%p262) target = $region56
        $region55: #{tpu_custom_call.1} parent=39 // pred_region
          %265 = dma.done [#allocation8], 128
        $region56: #{tpu_custom_call.1} parent=39 // pred_fallthru
          _
        // Predicated region
        $region57: #{tpu_custom_call.1} parent=39 // pred_check
          %p266 = pneg %p130
        $region58: #{tpu_custom_call.1} parent=39 // pred_check_branch
          %268 = sbr.rel (%p266) target = $region60
        $region59: #{tpu_custom_call.1} parent=39 // pred_region
          %269 = dma.done [#allocation11], 16
        $region60: #{tpu_custom_call.1} parent=39 // pred_fallthru
          _
        %270 = sfence
        %s271 = sand.u32 %s33, 1
        %s272 = scalar_lea.sflag [#allocation3], %s271
        %s273 = sand.u32 %s33, 1
        %s274 = smul.addr %s273, 8
        %s275 = scalar_lea.vmem [#allocation2], %s274
        %p276 = pneg %p46
        %p277 = pneg %p43
        %p278 = pneg %p67
        %p279 = pneg %p64
        %p280 = pneg %p88
        %p281 = pneg %p85
        %p282 = pneg %p109
        %p283 = pneg %p106
        %p284 = pneg %p130
        %p285 = pneg %p127
        %p286 = pneg %p156
        %p287 = pneg %p153
        %s288 = sand.u32 %s143, 1
        %s289 = scalar_lea.sflag [#allocation4], %s288
        %s290 = sand.u32 %s143, 1
        %s291 = smul.addr %s290, 16
        %s292 = scalar_lea.vmem [#allocation12], %s291
        %v293 = vld [vmem:[%s249] sm:$0xff]
        %s294 = sld [smem:[#allocation6]]
        %v295 = vstv %s294
        %v296 = vmul.f32 %v293, %v295
        %s297 = sld [smem:[#allocation6 + $0x80]]
        %v298 = vstv %s297
        %v299 = vmul.f32 %v293, %v298
        %v301 = vrot.slane %v299, 5
        %v302 = vrot.slane %v301, 4
        %v304 = vadd.f32 %v296, %v302
        %s305 = sld [smem:[#allocation6 + $0x100]]
        %v306 = vstv %s305
        %v307 = vmul.f32 %v293, %v306
        %v309 = vrot.slane %v307, 6
        %v310 = vrot.slane %v309, 4
        %v312 = vadd.f32 %v304, %v310
        %s313 = sld [smem:[#allocation6 + $0x180]]
        %v314 = vstv %s313
        %v315 = vmul.f32 %v293, %v314
        %v317 = vrot.slane %v315, 7
        %v318 = vrot.slane %v317, 4
        %v320 = vadd.f32 %v312, %v318
        %s321 = sld [smem:[#allocation7]]
        %v322 = vstv %s321
        %v323 = vadd.f32 %v320, %v322
        %v324 = vsub.f32 0.0, %v323
        %v325 = vmul.f32 %v324, 1.442695
        %v326 = vpow.pop %v325
        %v327 = vadd.f32 %v326, 1.0
        %v328 = vrcp.pop %v327
        %v329 = vmul.f32 1.0, %v328
        %v330 = vmul.f32 %v323, %v329
        %s331 = sld [smem:[#allocation6 + $0x1]]
        %v332 = vstv %s331
        %v333 = vmul.f32 %v293, %v332
        %s334 = sld [smem:[#allocation6 + $0x81]]
        %v335 = vstv %s334
        %v336 = vmul.f32 %v293, %v335
        %v338 = vrot.slane %v336, 5
        %v339 = vrot.slane %v338, 4
        %v341 = vadd.f32 %v333, %v339
        %s342 = sld [smem:[#allocation6 + $0x101]]
        %v343 = vstv %s342
        %v344 = vmul.f32 %v293, %v343
        %v346 = vrot.slane %v344, 6
        %v347 = vrot.slane %v346, 4
        %v349 = vadd.f32 %v341, %v347
        %s350 = sld [smem:[#allocation6 + $0x181]]
        %v351 = vstv %s350
        %v352 = vmul.f32 %v293, %v351
        %v354 = vrot.slane %v352, 7
        %v355 = vrot.slane %v354, 4
        %v357 = vadd.f32 %v349, %v355
        %s358 = sld [smem:[#allocation7 + $0x1]]
        %v359 = vstv %s358
        %v360 = vadd.f32 %v357, %v359
        %v361 = vsub.f32 0.0, %v360
        %v362 = vmul.f32 %v361, 1.442695
        %v363 = vpow.pop %v362
        %v364 = vadd.f32 %v363, 1.0
        %v365 = vrcp.pop %v364
        %v366 = vmul.f32 1.0, %v365
        %v367 = vmul.f32 %v360, %v366
        %v369 = vlaneseq
        %v370 = vshrl.u32 %v369, 7
        %v371 = vsub.s32 0, %v370
        %v372 = vrot.slane %v330, %v371
        %v373 = vlaneseq
        %v374 = vshrl.u32 %v373, 7
        %v375 = vsub.s32 4, %v374
        %v376 = vrot.slane %v330, %v375
        %v380 = vlaneseq
        %v381 = vshrl.u32 %v380, 7
        %v382 = vsub.s32 0, %v381
        %v383 = vrot.slane %v367, %v382
        %v384 = vlaneseq
        %v385 = vshrl.u32 %v384, 7
        %v386 = vsub.s32 4, %v385
        %v387 = vrot.slane %v367, %v386
        %vm390 = vcmask 1040384
        %v391 = vsel %vm390, %v372, %v383
        %v392 = vsel %vm390, %v376, %v387
        %v393 = vlaneseq
        %v394 = vand.u32 %v393, 127
        %v395 = vadd.s32 %v394, 128
        %v396 = vand.u32 %v394, 15
        %v397 = vand.u32 %v395, 15
        %vm398 = vcmp.ge.s32.totalorder %v396, 1
        %vm399 = vcmp.ge.s32.totalorder %v397, 1
        %vm400 = vcmp.lt.s32.totalorder %v396, 15
        %vm401 = vcmp.lt.s32.totalorder %v397, 15
        %vm402 = vcmp.ge.s32.totalorder %v396, 2
        %vm403 = vcmp.ge.s32.totalorder %v397, 2
        %vm404 = vcmp.lt.s32.totalorder %v396, 14
        %vm405 = vcmp.lt.s32.totalorder %v397, 14
        %408 = vrot.lane.b32.xlu0 %v391, 112
        %v409 = vpop.permute.xlu0 %408
        %410 = vrot.lane.b32.xlu0 %v392, 112
        %v411 = vpop.permute.xlu0 %410
        %vm412 = vcmask 916480
        %v413 = vsel %vm412, %v409, %v411
        %v416 = vsel %vm412, %v411, -3e+38
        %417 = vrot.lane.b32.xlu0 %v391, 16
        %v418 = vpop.permute.xlu0 %417
        %419 = vrot.lane.b32.xlu0 %v392, 16
        %v420 = vpop.permute.xlu0 %419
        %vm421 = vcmask 130048
        %v422 = vsel %vm421, %v418, %v420
        %v425 = vsel %vm421, -3e+38, %v418
        %v426 = vmax.f32 %v413, %v425
        %v427 = vmax.f32 %v416, %v422
        %v428 = vmax.f32 %v391, %v426
        %v429 = vmax.f32 %v392, %v427
        %430 = vrot.lane.b32.xlu0 %v391, 96
        %v431 = vpop.permute.xlu0 %430
        %432 = vrot.lane.b32.xlu0 %v392, 96
        %v433 = vpop.permute.xlu0 %432
        %vm434 = vcmask 785408
        %v435 = vsel %vm434, %v431, %v433
        %v438 = vsel %vm434, %v433, -3e+38
        %439 = vrot.lane.b32.xlu0 %v391, 32
        %v440 = vpop.permute.xlu0 %439
        %441 = vrot.lane.b32.xlu0 %v392, 32
        %v442 = vpop.permute.xlu0 %441
        %vm443 = vcmask 261120
        %v444 = vsel %vm443, %v440, %v442
        %v447 = vsel %vm443, -3e+38, %v440
        %v448 = vmax.f32 %v435, %v447
        %v449 = vmax.f32 %v438, %v444
        %v450 = vmax.f32 %v428, %v448
        %v451 = vmax.f32 %v429, %v449
        %454 = vrot.lane.b32.xlu0 %v450, 127
        %v455 = vpop.permute.xlu0 %454
        %456 = vrot.lane.b32.xlu0 %v451, 127
        %v457 = vpop.permute.xlu0 %456
        %vm458 = vcmask 1039360
        %v459 = vsel %vm458, %v455, %v457
        %v462 = vsel %vm458, %v457, -3e+38
        %v463 = vsel %vm400, %v459, -3e+38
        %v464 = vsel %vm401, %v462, -3e+38
        %465 = vrot.lane.b32.xlu0 %v450, 1
        %v466 = vpop.permute.xlu0 %465
        %467 = vrot.lane.b32.xlu0 %v451, 1
        %v468 = vpop.permute.xlu0 %467
        %vm469 = vcmask 7168
        %v470 = vsel %vm469, %v466, %v468
        %v473 = vsel %vm469, -3e+38, %v466
        %v474 = vsel %vm398, %v473, -3e+38
        %v475 = vsel %vm399, %v470, -3e+38
        %v476 = vmax.f32 %v463, %v474
        %v477 = vmax.f32 %v464, %v475
        %v478 = vmax.f32 %v450, %v476
        %v479 = vmax.f32 %v451, %v477
        %480 = vrot.lane.b32.xlu0 %v450, 126
        %v481 = vpop.permute.xlu0 %480
        %482 = vrot.lane.b32.xlu0 %v451, 126
        %v483 = vpop.permute.xlu0 %482
        %vm484 = vcmask 1031168
        %v485 = vsel %vm484, %v481, %v483
        %v488 = vsel %vm484, %v483, -3e+38
        %v489 = vsel %vm404, %v485, -3e+38
        %v490 = vsel %vm405, %v488, -3e+38
        %491 = vrot.lane.b32.xlu0 %v450, 2
        %v492 = vpop.permute.xlu0 %491
        %493 = vrot.lane.b32.xlu0 %v451, 2
        %v494 = vpop.permute.xlu0 %493
        %vm495 = vcmask 15360
        %v496 = vsel %vm495, %v492, %v494
        %v499 = vsel %vm495, -3e+38, %v492
        %v500 = vsel %vm402, %v499, -3e+38
        %v501 = vsel %vm403, %v496, -3e+38
        %v502 = vmax.f32 %v489, %v500
        %v503 = vmax.f32 %v490, %v501
        %v504 = vmax.f32 %v478, %v502
        %v505 = vmax.f32 %v479, %v503
        %508 = vrot.lane.b32.xlu0 %v504, 112
        %v509 = vpop.permute.xlu0 %508
        %510 = vrot.lane.b32.xlu0 %v505, 112
        %v511 = vpop.permute.xlu0 %510
        %v512 = vsel %vm412, %v509, %v511
        %v515 = vsel %vm412, %v511, -3e+38
        %516 = vrot.lane.b32.xlu0 %v504, 16
        %v517 = vpop.permute.xlu0 %516
        %518 = vrot.lane.b32.xlu0 %v505, 16
        %v519 = vpop.permute.xlu0 %518
        %v520 = vsel %vm421, %v517, %v519
        %v523 = vsel %vm421, -3e+38, %v517
        %v524 = vmax.f32 %v512, %v523
        %v525 = vmax.f32 %v515, %v520
        %v526 = vmax.f32 %v504, %v524
        %v527 = vmax.f32 %v505, %v525
        %528 = vrot.lane.b32.xlu0 %v504, 96
        %v529 = vpop.permute.xlu0 %528
        %530 = vrot.lane.b32.xlu0 %v505, 96
        %v531 = vpop.permute.xlu0 %530
        %v532 = vsel %vm434, %v529, %v531
        %v535 = vsel %vm434, %v531, -3e+38
        %536 = vrot.lane.b32.xlu0 %v504, 32
        %v537 = vpop.permute.xlu0 %536
        %538 = vrot.lane.b32.xlu0 %v505, 32
        %v539 = vpop.permute.xlu0 %538
        %v540 = vsel %vm443, %v537, %v539
        %v543 = vsel %vm443, -3e+38, %v537
        %v544 = vmax.f32 %v532, %v543
        %v545 = vmax.f32 %v535, %v540
        %v546 = vmax.f32 %v526, %v544
        %v547 = vmax.f32 %v527, %v545
        %550 = vrot.lane.b32.xlu0 %v546, 127
        %v551 = vpop.permute.xlu0 %550
        %552 = vrot.lane.b32.xlu0 %v547, 127
        %v553 = vpop.permute.xlu0 %552
        %v554 = vsel %vm458, %v551, %v553
        %v557 = vsel %vm458, %v553, -3e+38
        %v558 = vsel %vm400, %v554, -3e+38
        %v559 = vsel %vm401, %v557, -3e+38
        %560 = vrot.lane.b32.xlu0 %v546, 1
        %v561 = vpop.permute.xlu0 %560
        %562 = vrot.lane.b32.xlu0 %v547, 1
        %v563 = vpop.permute.xlu0 %562
        %v564 = vsel %vm469, %v561, %v563
        %v567 = vsel %vm469, -3e+38, %v561
        %v568 = vsel %vm398, %v567, -3e+38
        %v569 = vsel %vm399, %v564, -3e+38
        %v570 = vmax.f32 %v558, %v568
        %v571 = vmax.f32 %v559, %v569
        %v572 = vmax.f32 %v546, %v570
        %v573 = vmax.f32 %v547, %v571
        %574 = vrot.lane.b32.xlu0 %v546, 126
        %v575 = vpop.permute.xlu0 %574
        %576 = vrot.lane.b32.xlu0 %v547, 126
        %v577 = vpop.permute.xlu0 %576
        %v578 = vsel %vm484, %v575, %v577
        %v581 = vsel %vm484, %v577, -3e+38
        %v582 = vsel %vm404, %v578, -3e+38
        %v583 = vsel %vm405, %v581, -3e+38
        %584 = vrot.lane.b32.xlu0 %v546, 2
        %v585 = vpop.permute.xlu0 %584
        %586 = vrot.lane.b32.xlu0 %v547, 2
        %v587 = vpop.permute.xlu0 %586
        %v588 = vsel %vm495, %v585, %v587
        %v591 = vsel %vm495, -3e+38, %v585
        %v592 = vsel %vm402, %v591, -3e+38
        %v593 = vsel %vm403, %v588, -3e+38
        %v594 = vmax.f32 %v582, %v592
        %v595 = vmax.f32 %v583, %v593
        %v596 = vmax.f32 %v572, %v594
        %v597 = vmax.f32 %v573, %v595
        %600 = vrot.lane.b32.xlu0 %v596, 112
        %v601 = vpop.permute.xlu0 %600
        %602 = vrot.lane.b32.xlu0 %v597, 112
        %v603 = vpop.permute.xlu0 %602
        %v604 = vsel %vm412, %v601, %v603
        %v607 = vsel %vm412, %v603, -3e+38
        %608 = vrot.lane.b32.xlu0 %v596, 16
        %v609 = vpop.permute.xlu0 %608
        %610 = vrot.lane.b32.xlu0 %v597, 16
        %v611 = vpop.permute.xlu0 %610
        %v612 = vsel %vm421, %v609, %v611
        %v615 = vsel %vm421, -3e+38, %v609
        %v616 = vmax.f32 %v604, %v615
        %v617 = vmax.f32 %v607, %v612
        %v618 = vmax.f32 %v596, %v616
        %v619 = vmax.f32 %v597, %v617
        %620 = vrot.lane.b32.xlu0 %v596, 96
        %v621 = vpop.permute.xlu0 %620
        %622 = vrot.lane.b32.xlu0 %v597, 96
        %v623 = vpop.permute.xlu0 %622
        %v624 = vsel %vm434, %v621, %v623
        %v627 = vsel %vm434, %v623, -3e+38
        %628 = vrot.lane.b32.xlu0 %v596, 32
        %v629 = vpop.permute.xlu0 %628
        %630 = vrot.lane.b32.xlu0 %v597, 32
        %v631 = vpop.permute.xlu0 %630
        %v632 = vsel %vm443, %v629, %v631
        %v635 = vsel %vm443, -3e+38, %v629
        %v636 = vmax.f32 %v624, %v635
        %v637 = vmax.f32 %v627, %v632
        %v638 = vmax.f32 %v618, %v636
        %v639 = vmax.f32 %v619, %v637
        %642 = vrot.lane.b32.xlu0 %v638, 127
        %v643 = vpop.permute.xlu0 %642
        %644 = vrot.lane.b32.xlu0 %v639, 127
        %v645 = vpop.permute.xlu0 %644
        %v646 = vsel %vm458, %v643, %v645
        %v649 = vsel %vm458, %v645, -3e+38
        %v650 = vsel %vm400, %v646, -3e+38
        %v651 = vsel %vm401, %v649, -3e+38
        %652 = vrot.lane.b32.xlu0 %v638, 1
        %v653 = vpop.permute.xlu0 %652
        %654 = vrot.lane.b32.xlu0 %v639, 1
        %v655 = vpop.permute.xlu0 %654
        %v656 = vsel %vm469, %v653, %v655
        %v659 = vsel %vm469, -3e+38, %v653
        %v660 = vsel %vm398, %v659, -3e+38
        %v661 = vsel %vm399, %v656, -3e+38
        %v662 = vmax.f32 %v650, %v660
        %v663 = vmax.f32 %v651, %v661
        %v664 = vmax.f32 %v638, %v662
        %v665 = vmax.f32 %v639, %v663
        %666 = vrot.lane.b32.xlu0 %v638, 126
        %v667 = vpop.permute.xlu0 %666
        %668 = vrot.lane.b32.xlu0 %v639, 126
        %v669 = vpop.permute.xlu0 %668
        %v670 = vsel %vm484, %v667, %v669
        %v673 = vsel %vm484, %v669, -3e+38
        %v674 = vsel %vm404, %v670, -3e+38
        %v675 = vsel %vm405, %v673, -3e+38
        %676 = vrot.lane.b32.xlu0 %v638, 2
        %v677 = vpop.permute.xlu0 %676
        %678 = vrot.lane.b32.xlu0 %v639, 2
        %v679 = vpop.permute.xlu0 %678
        %v680 = vsel %vm495, %v677, %v679
        %v683 = vsel %vm495, -3e+38, %v677
        %v684 = vsel %vm402, %v683, -3e+38
        %v685 = vsel %vm403, %v680, -3e+38
        %v686 = vmax.f32 %v674, %v684
        %v687 = vmax.f32 %v675, %v685
        %v688 = vmax.f32 %v664, %v686
        %v689 = vmax.f32 %v665, %v687
        %s690 = sld [smem:[#allocation9]]
        %v691 = vstv %s690
        %v692 = vmul.f32 %v391, %v691
        %v693 = vmul.f32 %v392, %v691
        %s694 = sld [smem:[#allocation9 + $0x80]]
        %v695 = vstv %s694
        %v696 = vmul.f32 %v391, %v695
        %v697 = vmul.f32 %v392, %v695
        %v700 = vrot.slane %v696, 1
        %v701 = vrot.slane %v697, 1
        %v704 = vadd.f32 %v692, %v700
        %v705 = vadd.f32 %v693, %v701
        %s706 = sld [smem:[#allocation9 + $0x100]]
        %v707 = vstv %s706
        %v708 = vmul.f32 %v504, %v707
        %v709 = vmul.f32 %v505, %v707
        %v710 = vadd.f32 %v704, %v708
        %v711 = vadd.f32 %v705, %v709
        %s712 = sld [smem:[#allocation9 + $0x180]]
        %v713 = vstv %s712
        %v714 = vmul.f32 %v504, %v713
        %v715 = vmul.f32 %v505, %v713
        %v718 = vrot.slane %v714, 1
        %v719 = vrot.slane %v715, 1
        %v722 = vadd.f32 %v710, %v718
        %v723 = vadd.f32 %v711, %v719
        %s724 = sld [smem:[#allocation9 + $0x200]]
        %v725 = vstv %s724
        %v726 = vmul.f32 %v596, %v725
        %v727 = vmul.f32 %v597, %v725
        %v728 = vadd.f32 %v722, %v726
        %v729 = vadd.f32 %v723, %v727
        %s730 = sld [smem:[#allocation9 + $0x280]]
        %v731 = vstv %s730
        %v732 = vmul.f32 %v596, %v731
        %v733 = vmul.f32 %v597, %v731
        %v736 = vrot.slane %v732, 1
        %v737 = vrot.slane %v733, 1
        %v740 = vadd.f32 %v728, %v736
        %v741 = vadd.f32 %v729, %v737
        %s742 = sld [smem:[#allocation9 + $0x300]]
        %v743 = vstv %s742
        %v744 = vmul.f32 %v688, %v743
        %v745 = vmul.f32 %v689, %v743
        %v746 = vadd.f32 %v740, %v744
        %v747 = vadd.f32 %v741, %v745
        %s748 = sld [smem:[#allocation9 + $0x380]]
        %v749 = vstv %s748
        %v750 = vmul.f32 %v688, %v749
        %v751 = vmul.f32 %v689, %v749
        %v754 = vrot.slane %v750, 1
        %v755 = vrot.slane %v751, 1
        %v758 = vadd.f32 %v746, %v754
        %v759 = vadd.f32 %v747, %v755
        %s760 = sld [smem:[#allocation10]]
        %v761 = vstv %s760
        %v762 = vadd.f32 %v758, %v761
        %v763 = vadd.f32 %v759, %v761
        %s764 = sld [smem:[#allocation9 + $0x1]]
        %v765 = vstv %s764
        %v766 = vmul.f32 %v391, %v765
        %v767 = vmul.f32 %v392, %v765
        %s768 = sld [smem:[#allocation9 + $0x81]]
        %v769 = vstv %s768
        %v770 = vmul.f32 %v391, %v769
        %v771 = vmul.f32 %v392, %v769
        %v774 = vrot.slane %v770, 1
        %v775 = vrot.slane %v771, 1
        %v778 = vadd.f32 %v766, %v774
        %v779 = vadd.f32 %v767, %v775
        %s780 = sld [smem:[#allocation9 + $0x101]]
        %v781 = vstv %s780
        %v782 = vmul.f32 %v504, %v781
        %v783 = vmul.f32 %v505, %v781
        %v784 = vadd.f32 %v778, %v782
        %v785 = vadd.f32 %v779, %v783
        %s786 = sld [smem:[#allocation9 + $0x181]]
        %v787 = vstv %s786
        %v788 = vmul.f32 %v504, %v787
        %v789 = vmul.f32 %v505, %v787
        %v792 = vrot.slane %v788, 1
        %v793 = vrot.slane %v789, 1
        %v796 = vadd.f32 %v784, %v792
        %v797 = vadd.f32 %v785, %v793
        %s798 = sld [smem:[#allocation9 + $0x201]]
        %v799 = vstv %s798
        %v800 = vmul.f32 %v596, %v799
        %v801 = vmul.f32 %v597, %v799
        %v802 = vadd.f32 %v796, %v800
        %v803 = vadd.f32 %v797, %v801
        %s804 = sld [smem:[#allocation9 + $0x281]]
        %v805 = vstv %s804
        %v806 = vmul.f32 %v596, %v805
        %v807 = vmul.f32 %v597, %v805
        %v810 = vrot.slane %v806, 1
        %v811 = vrot.slane %v807, 1
        %v814 = vadd.f32 %v802, %v810
        %v815 = vadd.f32 %v803, %v811
        %s816 = sld [smem:[#allocation9 + $0x301]]
        %v817 = vstv %s816
        %v818 = vmul.f32 %v688, %v817
        %v819 = vmul.f32 %v689, %v817
        %v820 = vadd.f32 %v814, %v818
        %v821 = vadd.f32 %v815, %v819
        %s822 = sld [smem:[#allocation9 + $0x381]]
        %v823 = vstv %s822
        %v824 = vmul.f32 %v688, %v823
        %v825 = vmul.f32 %v689, %v823
        %v828 = vrot.slane %v824, 1
        %v829 = vrot.slane %v825, 1
        %v832 = vadd.f32 %v820, %v828
        %v833 = vadd.f32 %v821, %v829
        %s834 = sld [smem:[#allocation10 + $0x1]]
        %v835 = vstv %s834
        %v836 = vadd.f32 %v832, %v835
        %v837 = vadd.f32 %v833, %v835
        %s838 = sld [smem:[#allocation9 + $0x2]]
        %v839 = vstv %s838
        %v840 = vmul.f32 %v391, %v839
        %v841 = vmul.f32 %v392, %v839
        %s842 = sld [smem:[#allocation9 + $0x82]]
        %v843 = vstv %s842
        %v844 = vmul.f32 %v391, %v843
        %v845 = vmul.f32 %v392, %v843
        %v848 = vrot.slane %v844, 1
        %v849 = vrot.slane %v845, 1
        %v852 = vadd.f32 %v840, %v848
        %v853 = vadd.f32 %v841, %v849
        %s854 = sld [smem:[#allocation9 + $0x102]]
        %v855 = vstv %s854
        %v856 = vmul.f32 %v504, %v855
        %v857 = vmul.f32 %v505, %v855
        %v858 = vadd.f32 %v852, %v856
        %v859 = vadd.f32 %v853, %v857
        %s860 = sld [smem:[#allocation9 + $0x182]]
        %v861 = vstv %s860
        %v862 = vmul.f32 %v504, %v861
        %v863 = vmul.f32 %v505, %v861
        %v866 = vrot.slane %v862, 1
        %v867 = vrot.slane %v863, 1
        %v870 = vadd.f32 %v858, %v866
        %v871 = vadd.f32 %v859, %v867
        %s872 = sld [smem:[#allocation9 + $0x202]]
        %v873 = vstv %s872
        %v874 = vmul.f32 %v596, %v873
        %v875 = vmul.f32 %v597, %v873
        %v876 = vadd.f32 %v870, %v874
        %v877 = vadd.f32 %v871, %v875
        %s878 = sld [smem:[#allocation9 + $0x282]]
        %v879 = vstv %s878
        %v880 = vmul.f32 %v596, %v879
        %v881 = vmul.f32 %v597, %v879
        %v884 = vrot.slane %v880, 1
        %v885 = vrot.slane %v881, 1
        %v888 = vadd.f32 %v876, %v884
        %v889 = vadd.f32 %v877, %v885
        %s890 = sld [smem:[#allocation9 + $0x302]]
        %v891 = vstv %s890
        %v892 = vmul.f32 %v688, %v891
        %v893 = vmul.f32 %v689, %v891
        %v894 = vadd.f32 %v888, %v892
        %v895 = vadd.f32 %v889, %v893
        %s896 = sld [smem:[#allocation9 + $0x382]]
        %v897 = vstv %s896
        %v898 = vmul.f32 %v688, %v897
        %v899 = vmul.f32 %v689, %v897
        %v902 = vrot.slane %v898, 1
        %v903 = vrot.slane %v899, 1
        %v906 = vadd.f32 %v894, %v902
        %v907 = vadd.f32 %v895, %v903
        %s908 = sld [smem:[#allocation10 + $0x2]]
        %v909 = vstv %s908
        %v910 = vadd.f32 %v906, %v909
        %v911 = vadd.f32 %v907, %v909
        %s912 = sld [smem:[#allocation9 + $0x3]]
        %v913 = vstv %s912
        %v914 = vmul.f32 %v391, %v913
        %v915 = vmul.f32 %v392, %v913
        %s916 = sld [smem:[#allocation9 + $0x83]]
        %v917 = vstv %s916
        %v918 = vmul.f32 %v391, %v917
        %v919 = vmul.f32 %v392, %v917
        %v922 = vrot.slane %v918, 1
        %v923 = vrot.slane %v919, 1
        %v926 = vadd.f32 %v914, %v922
        %v927 = vadd.f32 %v915, %v923
        %s928 = sld [smem:[#allocation9 + $0x103]]
        %v929 = vstv %s928
        %v930 = vmul.f32 %v504, %v929
        %v931 = vmul.f32 %v505, %v929
        %v932 = vadd.f32 %v926, %v930
        %v933 = vadd.f32 %v927, %v931
        %s934 = sld [smem:[#allocation9 + $0x183]]
        %v935 = vstv %s934
        %v936 = vmul.f32 %v504, %v935
        %v937 = vmul.f32 %v505, %v935
        %v940 = vrot.slane %v936, 1
        %v941 = vrot.slane %v937, 1
        %v944 = vadd.f32 %v932, %v940
        %v945 = vadd.f32 %v933, %v941
        %s946 = sld [smem:[#allocation9 + $0x203]]
        %v947 = vstv %s946
        %v948 = vmul.f32 %v596, %v947
        %v949 = vmul.f32 %v597, %v947
        %v950 = vadd.f32 %v944, %v948
        %v951 = vadd.f32 %v945, %v949
        %s952 = sld [smem:[#allocation9 + $0x283]]
        %v953 = vstv %s952
        %v954 = vmul.f32 %v596, %v953
        %v955 = vmul.f32 %v597, %v953
        %v958 = vrot.slane %v954, 1
        %v959 = vrot.slane %v955, 1
        %v962 = vadd.f32 %v950, %v958
        %v963 = vadd.f32 %v951, %v959
        %s964 = sld [smem:[#allocation9 + $0x303]]
        %v965 = vstv %s964
        %v966 = vmul.f32 %v688, %v965
        %v967 = vmul.f32 %v689, %v965
        %v968 = vadd.f32 %v962, %v966
        %v969 = vadd.f32 %v963, %v967
        %s970 = sld [smem:[#allocation9 + $0x383]]
        %v971 = vstv %s970
        %v972 = vmul.f32 %v688, %v971
        %v973 = vmul.f32 %v689, %v971
        %v976 = vrot.slane %v972, 1
        %v977 = vrot.slane %v973, 1
        %v980 = vadd.f32 %v968, %v976
        %v981 = vadd.f32 %v969, %v977
        %s982 = sld [smem:[#allocation10 + $0x3]]
        %v983 = vstv %s982
        %v984 = vadd.f32 %v980, %v983
        %v985 = vadd.f32 %v981, %v983
        %s986 = sld [smem:[#allocation9 + $0x4]]
        %v987 = vstv %s986
        %v988 = vmul.f32 %v391, %v987
        %v989 = vmul.f32 %v392, %v987
        %s990 = sld [smem:[#allocation9 + $0x84]]
        %v991 = vstv %s990
        %v992 = vmul.f32 %v391, %v991
        %v993 = vmul.f32 %v392, %v991
        %v996 = vrot.slane %v992, 1
        %v997 = vrot.slane %v993, 1
        %v1000 = vadd.f32 %v988, %v996
        %v1001 = vadd.f32 %v989, %v997
        %s1002 = sld [smem:[#allocation9 + $0x104]]
        %v1003 = vstv %s1002
        %v1004 = vmul.f32 %v504, %v1003
        %v1005 = vmul.f32 %v505, %v1003
        %v1006 = vadd.f32 %v1000, %v1004
        %v1007 = vadd.f32 %v1001, %v1005
        %s1008 = sld [smem:[#allocation9 + $0x184]]
        %v1009 = vstv %s1008
        %v1010 = vmul.f32 %v504, %v1009
        %v1011 = vmul.f32 %v505, %v1009
        %v1014 = vrot.slane %v1010, 1
        %v1015 = vrot.slane %v1011, 1
        %v1018 = vadd.f32 %v1006, %v1014
        %v1019 = vadd.f32 %v1007, %v1015
        %s1020 = sld [smem:[#allocation9 + $0x204]]
        %v1021 = vstv %s1020
        %v1022 = vmul.f32 %v596, %v1021
        %v1023 = vmul.f32 %v597, %v1021
        %v1024 = vadd.f32 %v1018, %v1022
        %v1025 = vadd.f32 %v1019, %v1023
        %s1026 = sld [smem:[#allocation9 + $0x284]]
        %v1027 = vstv %s1026
        %v1028 = vmul.f32 %v596, %v1027
        %v1029 = vmul.f32 %v597, %v1027
        %v1032 = vrot.slane %v1028, 1
        %v1033 = vrot.slane %v1029, 1
        %v1036 = vadd.f32 %v1024, %v1032
        %v1037 = vadd.f32 %v1025, %v1033
        %s1038 = sld [smem:[#allocation9 + $0x304]]
        %v1039 = vstv %s1038
        %v1040 = vmul.f32 %v688, %v1039
        %v1041 = vmul.f32 %v689, %v1039
        %v1042 = vadd.f32 %v1036, %v1040
        %v1043 = vadd.f32 %v1037, %v1041
        %s1044 = sld [smem:[#allocation9 + $0x384]]
        %v1045 = vstv %s1044
        %v1046 = vmul.f32 %v688, %v1045
        %v1047 = vmul.f32 %v689, %v1045
        %v1050 = vrot.slane %v1046, 1
        %v1051 = vrot.slane %v1047, 1
        %v1054 = vadd.f32 %v1042, %v1050
        %v1055 = vadd.f32 %v1043, %v1051
        %s1056 = sld [smem:[#allocation10 + $0x4]]
        %v1057 = vstv %s1056
        %v1058 = vadd.f32 %v1054, %v1057
        %v1059 = vadd.f32 %v1055, %v1057
        %s1060 = sld [smem:[#allocation9 + $0x5]]
        %v1061 = vstv %s1060
        %v1062 = vmul.f32 %v391, %v1061
        %v1063 = vmul.f32 %v392, %v1061
        %s1064 = sld [smem:[#allocation9 + $0x85]]
        %v1065 = vstv %s1064
        %v1066 = vmul.f32 %v391, %v1065
        %v1067 = vmul.f32 %v392, %v1065
        %v1070 = vrot.slane %v1066, 1
        %v1071 = vrot.slane %v1067, 1
        %v1074 = vadd.f32 %v1062, %v1070
        %v1075 = vadd.f32 %v1063, %v1071
        %s1076 = sld [smem:[#allocation9 + $0x105]]
        %v1077 = vstv %s1076
        %v1078 = vmul.f32 %v504, %v1077
        %v1079 = vmul.f32 %v505, %v1077
        %v1080 = vadd.f32 %v1074, %v1078
        %v1081 = vadd.f32 %v1075, %v1079
        %s1082 = sld [smem:[#allocation9 + $0x185]]
        %v1083 = vstv %s1082
        %v1084 = vmul.f32 %v504, %v1083
        %v1085 = vmul.f32 %v505, %v1083
        %v1088 = vrot.slane %v1084, 1
        %v1089 = vrot.slane %v1085, 1
        %v1092 = vadd.f32 %v1080, %v1088
        %v1093 = vadd.f32 %v1081, %v1089
        %s1094 = sld [smem:[#allocation9 + $0x205]]
        %v1095 = vstv %s1094
        %v1096 = vmul.f32 %v596, %v1095
        %v1097 = vmul.f32 %v597, %v1095
        %v1098 = vadd.f32 %v1092, %v1096
        %v1099 = vadd.f32 %v1093, %v1097
        %s1100 = sld [smem:[#allocation9 + $0x285]]
        %v1101 = vstv %s1100
        %v1102 = vmul.f32 %v596, %v1101
        %v1103 = vmul.f32 %v597, %v1101
        %v1106 = vrot.slane %v1102, 1
        %v1107 = vrot.slane %v1103, 1
        %v1110 = vadd.f32 %v1098, %v1106
        %v1111 = vadd.f32 %v1099, %v1107
        %s1112 = sld [smem:[#allocation9 + $0x305]]
        %v1113 = vstv %s1112
        %v1114 = vmul.f32 %v688, %v1113
        %v1115 = vmul.f32 %v689, %v1113
        %v1116 = vadd.f32 %v1110, %v1114
        %v1117 = vadd.f32 %v1111, %v1115
        %s1118 = sld [smem:[#allocation9 + $0x385]]
        %v1119 = vstv %s1118
        %v1120 = vmul.f32 %v688, %v1119
        %v1121 = vmul.f32 %v689, %v1119
        %v1124 = vrot.slane %v1120, 1
        %v1125 = vrot.slane %v1121, 1
        %v1128 = vadd.f32 %v1116, %v1124
        %v1129 = vadd.f32 %v1117, %v1125
        %s1130 = sld [smem:[#allocation10 + $0x5]]
        %v1131 = vstv %s1130
        %v1132 = vadd.f32 %v1128, %v1131
        %v1133 = vadd.f32 %v1129, %v1131
        %s1134 = sld [smem:[#allocation9 + $0x6]]
        %v1135 = vstv %s1134
        %v1136 = vmul.f32 %v391, %v1135
        %v1137 = vmul.f32 %v392, %v1135
        %s1138 = sld [smem:[#allocation9 + $0x86]]
        %v1139 = vstv %s1138
        %v1140 = vmul.f32 %v391, %v1139
        %v1141 = vmul.f32 %v392, %v1139
        %v1144 = vrot.slane %v1140, 1
        %v1145 = vrot.slane %v1141, 1
        %v1148 = vadd.f32 %v1136, %v1144
        %v1149 = vadd.f32 %v1137, %v1145
        %s1150 = sld [smem:[#allocation9 + $0x106]]
        %v1151 = vstv %s1150
        %v1152 = vmul.f32 %v504, %v1151
        %v1153 = vmul.f32 %v505, %v1151
        %v1154 = vadd.f32 %v1148, %v1152
        %v1155 = vadd.f32 %v1149, %v1153
        %s1156 = sld [smem:[#allocation9 + $0x186]]
        %v1157 = vstv %s1156
        %v1158 = vmul.f32 %v504, %v1157
        %v1159 = vmul.f32 %v505, %v1157
        %v1162 = vrot.slane %v1158, 1
        %v1163 = vrot.slane %v1159, 1
        %v1166 = vadd.f32 %v1154, %v1162
        %v1167 = vadd.f32 %v1155, %v1163
        %s1168 = sld [smem:[#allocation9 + $0x206]]
        %v1169 = vstv %s1168
        %v1170 = vmul.f32 %v596, %v1169
        %v1171 = vmul.f32 %v597, %v1169
        %v1172 = vadd.f32 %v1166, %v1170
        %v1173 = vadd.f32 %v1167, %v1171
        %s1174 = sld [smem:[#allocation9 + $0x286]]
        %v1175 = vstv %s1174
        %v1176 = vmul.f32 %v596, %v1175
        %v1177 = vmul.f32 %v597, %v1175
        %v1180 = vrot.slane %v1176, 1
        %v1181 = vrot.slane %v1177, 1
        %v1184 = vadd.f32 %v1172, %v1180
        %v1185 = vadd.f32 %v1173, %v1181
        %s1186 = sld [smem:[#allocation9 + $0x306]]
        %v1187 = vstv %s1186
        %v1188 = vmul.f32 %v688, %v1187
        %v1189 = vmul.f32 %v689, %v1187
        %v1190 = vadd.f32 %v1184, %v1188
        %v1191 = vadd.f32 %v1185, %v1189
        %s1192 = sld [smem:[#allocation9 + $0x386]]
        %v1193 = vstv %s1192
        %v1194 = vmul.f32 %v688, %v1193
        %v1195 = vmul.f32 %v689, %v1193
        %v1198 = vrot.slane %v1194, 1
        %v1199 = vrot.slane %v1195, 1
        %v1202 = vadd.f32 %v1190, %v1198
        %v1203 = vadd.f32 %v1191, %v1199
        %s1204 = sld [smem:[#allocation10 + $0x6]]
        %v1205 = vstv %s1204
        %v1206 = vadd.f32 %v1202, %v1205
        %v1207 = vadd.f32 %v1203, %v1205
        %s1208 = sld [smem:[#allocation9 + $0x7]]
        %v1209 = vstv %s1208
        %v1210 = vmul.f32 %v391, %v1209
        %v1211 = vmul.f32 %v392, %v1209
        %s1212 = sld [smem:[#allocation9 + $0x87]]
        %v1213 = vstv %s1212
        %v1214 = vmul.f32 %v391, %v1213
        %v1215 = vmul.f32 %v392, %v1213
        %v1218 = vrot.slane %v1214, 1
        %v1219 = vrot.slane %v1215, 1
        %v1222 = vadd.f32 %v1210, %v1218
        %v1223 = vadd.f32 %v1211, %v1219
        %s1224 = sld [smem:[#allocation9 + $0x107]]
        %v1225 = vstv %s1224
        %v1226 = vmul.f32 %v504, %v1225
        %v1227 = vmul.f32 %v505, %v1225
        %v1228 = vadd.f32 %v1222, %v1226
        %v1229 = vadd.f32 %v1223, %v1227
        %s1230 = sld [smem:[#allocation9 + $0x187]]
        %v1231 = vstv %s1230
        %v1232 = vmul.f32 %v504, %v1231
        %v1233 = vmul.f32 %v505, %v1231
        %v1236 = vrot.slane %v1232, 1
        %v1237 = vrot.slane %v1233, 1
        %v1240 = vadd.f32 %v1228, %v1236
        %v1241 = vadd.f32 %v1229, %v1237
        %s1242 = sld [smem:[#allocation9 + $0x207]]
        %v1243 = vstv %s1242
        %v1244 = vmul.f32 %v596, %v1243
        %v1245 = vmul.f32 %v597, %v1243
        %v1246 = vadd.f32 %v1240, %v1244
        %v1247 = vadd.f32 %v1241, %v1245
        %s1248 = sld [smem:[#allocation9 + $0x287]]
        %v1249 = vstv %s1248
        %v1250 = vmul.f32 %v596, %v1249
        %v1251 = vmul.f32 %v597, %v1249
        %v1254 = vrot.slane %v1250, 1
        %v1255 = vrot.slane %v1251, 1
        %v1258 = vadd.f32 %v1246, %v1254
        %v1259 = vadd.f32 %v1247, %v1255
        %s1260 = sld [smem:[#allocation9 + $0x307]]
        %v1261 = vstv %s1260
        %v1262 = vmul.f32 %v688, %v1261
        %v1263 = vmul.f32 %v689, %v1261
        %v1264 = vadd.f32 %v1258, %v1262
        %v1265 = vadd.f32 %v1259, %v1263
        %s1266 = sld [smem:[#allocation9 + $0x387]]
        %v1267 = vstv %s1266
        %v1268 = vmul.f32 %v688, %v1267
        %v1269 = vmul.f32 %v689, %v1267
        %v1272 = vrot.slane %v1268, 1
        %v1273 = vrot.slane %v1269, 1
        %v1276 = vadd.f32 %v1264, %v1272
        %v1277 = vadd.f32 %v1265, %v1273
        %s1278 = sld [smem:[#allocation10 + $0x7]]
        %v1279 = vstv %s1278
        %v1280 = vadd.f32 %v1276, %v1279
        %v1281 = vadd.f32 %v1277, %v1279
        %v1284 = vrot.slane %v836, 7
        %v1285 = vrot.slane %v837, 7
        %v1290 = vrot.slane %v910, 6
        %v1291 = vrot.slane %v911, 6
        %v1296 = vrot.slane %v984, 5
        %v1297 = vrot.slane %v985, 5
        %v1302 = vrot.slane %v1058, 4
        %v1303 = vrot.slane %v1059, 4
        %v1308 = vrot.slane %v1132, 3
        %v1309 = vrot.slane %v1133, 3
        %v1314 = vrot.slane %v1206, 2
        %v1315 = vrot.slane %v1207, 2
        %v1320 = vrot.slane %v1280, 1
        %v1321 = vrot.slane %v1281, 1
        %v1324 = vsel %vm390, %v762, %v1284
        %v1325 = vsel %vm390, %v763, %v1285
        %vm1326 = vcmask 1041408
        %v1327 = vsel %vm1326, %v1324, %v1290
        %v1328 = vsel %vm1326, %v1325, %v1291
        %vm1329 = vcmask 1042432
        %v1330 = vsel %vm1329, %v1327, %v1296
        %v1331 = vsel %vm1329, %v1328, %v1297
        %vm1332 = vcmask 1043456
        %v1333 = vsel %vm1332, %v1330, %v1302
        %v1334 = vsel %vm1332, %v1331, %v1303
        %vm1335 = vcmask 1044480
        %v1336 = vsel %vm1335, %v1333, %v1308
        %v1337 = vsel %vm1335, %v1334, %v1309
        %vm1338 = vcmask 1045504
        %v1339 = vsel %vm1338, %v1336, %v1314
        %v1340 = vsel %vm1338, %v1337, %v1315
        %vm1341 = vcmask 1046528
        %v1342 = vsel %vm1341, %v1339, %v1320
        %v1343 = vsel %vm1341, %v1340, %v1321
        %v1344 = vsub.f32 0.0, %v1342
        %v1345 = vsub.f32 0.0, %v1343
        %v1346 = vmul.f32 %v1344, 1.442695
        %v1347 = vpow.pop %v1346
        %v1348 = vmul.f32 %v1345, 1.442695
        %v1349 = vpow.pop %v1348
        %v1350 = vadd.f32 %v1347, 1.0
        %v1351 = vadd.f32 %v1349, 1.0
        %v1352 = vrcp.pop %v1350
        %v1353 = vmul.f32 1.0, %v1352
        %v1354 = vrcp.pop %v1351
        %v1355 = vmul.f32 1.0, %v1354
        %v1356 = vmul.f32 %v1342, %v1353
        %v1357 = vmul.f32 %v1343, %v1355
        %1358 = vst [vmem:[%s292] sm:$0xff] %v1356
        %1359 = vst [vmem:[%s292 + $0x8] sm:$0xff] %v1357
        %s1360 = sand.u32 %s143, 1
        %s1361 = scalar_lea.sflag [#allocation4], %s1360
        %s1362 = sand.u32 %s143, 1
        %s1363 = smul.addr %s1362, 16
        %s1364 = scalar_lea.vmem [#allocation12], %s1363
        // Predicated region
        $region61: #{tpu_custom_call.1} parent=39 // pred_check
          %p1365 = pneg %p153
        $region62: #{tpu_custom_call.1} parent=39 // pred_check_branch
          %1367 = sbr.rel (%p1365) target = $region64
        $region63: #{tpu_custom_call.1} parent=39 // pred_region
          %s1369 = ssub.s32 256, 256
          %1370 = vsyncadd %s1361, %s1369
          %s1371 = smul.addr %s25, 2
          %s1372 = smul.addr %s1371, 128
          %s1373 = scalar_lea.hbm %s5, %s1372
          %s1375 = sshll.u32 %s1364, 4
          %s1376 = int_to_ptr.vmem [resolvable:$true] %s1375
          %1378 = dma.vmem_to_hbm [thread:$0]  %s1376, 256, %s1373, %s1361
        $region64: #{tpu_custom_call.1} parent=39 // pred_fallthru
          _
      $region40: #{tpu_custom_call.1} parent=5 // pred_fallthru
        _
      %p1379 = scmp.le.s32.totalorder 2, %s20
      // Predicated region
      $region65: #{tpu_custom_call.1} parent=5 // pred_check
        %p1380 = pneg %p1379
      $region66: #{tpu_custom_call.1} parent=5 // pred_check_branch
        %1382 = sbr.rel (%p1380) target = $region68
      $region67: #{tpu_custom_call.1} parent=5 // pred_region
        %s1383 = ssub.s32 %s20, 2
        // Predicated region
        $region69: #{tpu_custom_call.1} parent=67 // pred_check
          %p1384 = pneg %p159
        $region70: #{tpu_custom_call.1} parent=67 // pred_check_branch
          %1386 = sbr.rel (%p1384) target = $region72
        $region71: #{tpu_custom_call.1} parent=67 // pred_region
          %s1387 = sand.u32 %s144, 1
          %s1388 = scalar_lea.sflag [#allocation4], %s1387
          %s1389 = sand.u32 %s144, 1
          %s1390 = smul.addr %s1389, 16
          %s1391 = scalar_lea.vmem [#allocation12], %s1390
          %1392 = dma.done %s1388, 256
        $region72: #{tpu_custom_call.1} parent=67 // pred_fallthru
          _
      $region68: #{tpu_custom_call.1} parent=5 // pred_fallthru
        _
    $region6: #{tpu_custom_call.1} parent=1 // loop_footer
      %s24 = sadd.s32 1, %s20
    $region7: #{tpu_custom_call.1} parent=1 // loop_footer_branch
      %19 = sbr.rel target = $region3
    $region8: #{tpu_custom_call.1} parent=1 // loop_exit
      _
    %1393 = vsyncpa [#allocation3], 1
    %s1394 = scalar_lea.sflag [#allocation3], 1
    %1395 = vsyncpa %s1394, 1
    %1396 = vsyncpa [#allocation4], 1
    %s1397 = scalar_lea.sflag [#allocation4], 1
    %1398 = vsyncpa %s1397, 1
    %1399 = vsyncpa [#allocation5], 1
    %s1400 = scalar_lea.sflag [#allocation5], 1
    %1401 = vsyncpa %s1400, 1
    %1402 = vsyncpa [#allocation8], 1
    %1403 = vsyncpa [#allocation11], 1

</llo_original>
